<compile_context>
chip_gen: v7x
topology: tpu7x:2x2x1
jax: 0.10.0
libtpu: 0.0.40
codegen_flags: <defaults>
</compile_context>

<pallas_src>
import math
import functools

import jax
import jax.numpy as jnp
from jax.experimental import pallas as pl
from jax.experimental.pallas import tpu as pltpu


# ----------------------------- Pallas kernel ---------------------------------

def transformer_block_kernel(x_ref, n1w_ref, wq_ref, wk_ref, wv_ref, wo_ref,
                             n2w_ref, w1_ref, w2_ref, w3_ref, cos_ref, sin_ref,
                             o_ref, ctx_scratch,
                             *, num_heads, num_kv_groups, head_dim, eps):
    f32 = jnp.float32
    cdt = wq_ref.dtype                          # MXU operand dtype (f32 or bf16)
    x = x_ref[...].astype(f32)                  # (S, E)
    S, E = x.shape
    gs = num_heads // num_kv_groups
    hd = head_dim
    half = hd // 2
    scale = 1.0 / math.sqrt(hd)

    # ---- RMSNorm 1 (f32) ----
    h = x * jax.lax.rsqrt(jnp.mean(x * x, axis=-1, keepdims=True) + eps) * n1w_ref[...]
    hc = h.astype(cdt)

    # ---- fused QKV projections: full-width MXU matmuls, f32 accumulation ----
    q = jnp.dot(hc, wq_ref[...], preferred_element_type=f32)      # (S, H*hd)
    k = jnp.dot(hc, wk_ref[...], preferred_element_type=f32)      # (S, KV*hd)
    v = jnp.dot(hc, wv_ref[...], preferred_element_type=f32)      # (S, KV*hd)

    # ---- head-major stacking (leading head axis; static lane slices) ----
    qh = jnp.stack([q[:, i * hd:(i + 1) * hd] for i in range(num_heads)], axis=0)      # (H,  S, hd)
    kg = jnp.stack([k[:, g * hd:(g + 1) * hd] for g in range(num_kv_groups)], axis=0)  # (KV, S, hd)
    vg = jnp.stack([v[:, g * hd:(g + 1) * hd] for g in range(num_kv_groups)], axis=0)  # (KV, S, hd)

    # ---- RoPE applied once per tensor, batched over the head axis ----
    cos = cos_ref[...][None]                                      # (1, S, hd)
    sin = sin_ref[...][None]

    def rope(t):                                                  # t: (N, S, hd)
        rot = jnp.concatenate([-t[..., half:], t[..., :half]], axis=-1)
        return t * cos + rot * sin

    qh = rope(qh)
    kg = rope(kg)

    # ---- GQA: expand KV groups to query heads (repeat_interleave on head axis) ----
    kh = jnp.broadcast_to(kg[:, None], (num_kv_groups, gs, S, hd)).reshape(num_heads, S, hd)
    vh = jnp.broadcast_to(vg[:, None], (num_kv_groups, gs, S, hd)).reshape(num_heads, S, hd)

    # ---- batched causal attention: single (H, S, S) score tensor, no transposes ----
    s = jax.lax.dot_general(qh.astype(cdt), kh.astype(cdt),
                            (((2,), (2,)), ((0,), (0,))),
                            preferred_element_type=f32) * scale   # (H, S, S)
    rows = jax.lax.broadcasted_iota(jnp.int32, (S, S), 0)
    cols = jax.lax.broadcasted_iota(jnp.int32, (S, S), 1)
    s = jnp.where((cols <= rows)[None], s, -jnp.inf)
    m = jnp.max(s, axis=-1, keepdims=True)
    p = jnp.exp(s - m)
    denom = jnp.sum(p, axis=-1, keepdims=True)
    p = p * pl.reciprocal(denom, approx=True)                     # EUP slot, off VALU path
    ctx = jax.lax.dot_general(p.astype(cdt), vh.astype(cdt),
                              (((2,), (1,)), ((0,), (0,))),
                              preferred_element_type=f32)         # (H, S, hd)

    # ---- write head contexts into VMEM scratch at static lane offsets (no concat) ----
    for i in range(num_heads):
        ctx_scratch[:, i * hd:(i + 1) * hd] = ctx[i]

    attn_out = jnp.dot(ctx_scratch[...].astype(cdt), wo_ref[...],
                       preferred_element_type=f32)                # (S, E)
    h1 = x + attn_out                                             # residual 1

    # ---- RMSNorm 2 + SwiGLU feed-forward ----
    h2 = h1 * jax.lax.rsqrt(jnp.mean(h1 * h1, axis=-1, keepdims=True) + eps) * n2w_ref[...]
    h2c = h2.astype(cdt)
    a = jnp.dot(h2c, w1_ref[...], preferred_element_type=f32)     # (S, hidden)
    b = jnp.dot(h2c, w2_ref[...], preferred_element_type=f32)     # (S, hidden)
    gated = a * jax.nn.sigmoid(a) * b                             # silu(a) * b, f32
    ff = jnp.dot(gated.astype(cdt), w3_ref[...], preferred_element_type=f32)

    o_ref[...] = (h1 + ff).astype(o_ref.dtype)                    # residual 2


# ------------------------------ wrapper ---------------------------------------

def transformer_block(x, params, cos, sin, attn_mask=None, *,
                      num_heads, num_kv_groups, eps=1e-5,
                      compute_dtype=jnp.float32):
    # attn_mask intentionally ignored: the PyTorch module uses SDPA(is_causal=True).
    del attn_mask
    B, S, E = x.shape
    head_dim = E // num_heads
    hidden = params["w1"].shape[1]
    kv_dim = num_kv_groups * head_dim

    # matmul weights cast to the MXU operand dtype in the wrapper (free);
    # norm weights / cos / sin stay f32 for the f32 elementwise path.
    wq = params["wq"].astype(compute_dtype)
    wk = params["wk"].astype(compute_dtype)
    wv = params["wv"].astype(compute_dtype)
    wo = params["wo"].astype(compute_dtype)
    w1 = params["w1"].astype(compute_dtype)
    w2 = params["w2"].astype(compute_dtype)
    w3 = params["w3"].astype(compute_dtype)
    n1w = params["n1w"].astype(jnp.float32)
    n2w = params["n2w"].astype(jnp.float32)
    cos32 = cos.astype(jnp.float32)
    sin32 = sin.astype(jnp.float32)

    kernel = functools.partial(
        transformer_block_kernel,
        num_heads=num_heads, num_kv_groups=num_kv_groups,
        head_dim=head_dim, eps=eps)

    def full2d(arr):
        # constant index_map -> block DMA'd once, not re-fetched per grid step
        return pl.BlockSpec(arr.shape, lambda b: (0, 0))

    in_specs = [
        pl.BlockSpec((None, S, E), lambda b: (b, 0, 0)),   # x -> (S, E) per grid step
        full2d(n1w),
        full2d(wq), full2d(wk), full2d(wv), full2d(wo),
        full2d(n2w),
        full2d(w1), full2d(w2), full2d(w3),
        full2d(cos32), full2d(sin32),
    ]
    out_spec = pl.BlockSpec((None, S, E), lambda b: (b, 0, 0))

    # advisory cost estimate for the fused block
    flops = 2 * B * S * (E * (E + 2 * kv_dim)               # qkv projections
                         + 2 * num_heads * S * head_dim     # scores + p@v
                         + E * E                            # out projection
                         + 3 * E * hidden)                  # swiglu ff
    transcendentals = B * S * (num_heads * S + hidden + num_heads + 2)
    itemsize = jnp.dtype(x.dtype).itemsize
    bytes_accessed = int(2 * x.size * itemsize
                         + sum(int(w.size) * jnp.dtype(w.dtype).itemsize
                               for w in (n1w, wq, wk, wv, wo, n2w, w1, w2, w3,
                                         cos32, sin32)))

    return pl.pallas_call(
        kernel,
        out_shape=jax.ShapeDtypeStruct((B, S, E), x.dtype),
        grid=(B,),
        in_specs=in_specs,
        out_specs=out_spec,
        scratch_shapes=[pltpu.VMEM((S, E), jnp.float32)],
        compiler_params=pltpu.CompilerParams(
            dimension_semantics=("parallel",),
            vmem_limit_bytes=48 * 1024 * 1024),
        cost_estimate=pl.CostEstimate(flops=int(flops),
                                      transcendentals=int(transcendentals),
                                      bytes_accessed=bytes_accessed),
    )(x, n1w, wq, wk, wv, wo, n2w, w1, w2, w3, cos32, sin32)


# --------------------------- pure-JAX reference --------------------------------

def reference_block(x, params, cos, sin, *, num_heads, num_kv_groups, eps=1e-5):
    B, S, E = x.shape
    hd = E // num_heads
    gs = num_heads // num_kv_groups

    def rmsnorm(t, w):
        return t * jax.lax.rsqrt(jnp.mean(t * t, axis=-1, keepdims=True) + eps) * w[0]

    def rope(t):  # t: (B, H, S, hd)
        t1, t2 = t[..., :hd // 2], t[..., hd // 2:]
        rot = jnp.concatenate([-t2, t1], axis=-1)
        return t * cos[None, None] + rot * sin[None, None]

    h = rmsnorm(x, params["n1w"])
    q = (h @ params["wq"]).reshape(B, S, num_heads, hd).transpose(0, 2, 1, 3)
    k = (h @ params["wk"]).reshape(B, S, num_kv_groups, hd).transpose(0, 2, 1, 3)
    v = (h @ params["wv"]).reshape(B, S, num_kv_groups, hd).transpose(0, 2, 1, 3)
    q, k = rope(q), rope(k)
    k = jnp.repeat(k, gs, axis=1)
    v = jnp.repeat(v, gs, axis=1)
    s = jnp.einsum("bhqd,bhkd->bhqk", q, k) / math.sqrt(hd)
    causal = jnp.tril(jnp.ones((S, S), dtype=bool))
    s = jnp.where(causal, s, -jnp.inf)
    p = jax.nn.softmax(s, axis=-1)
    ctx = jnp.einsum("bhqk,bhkd->bhqd", p, v).transpose(0, 2, 1, 3).reshape(B, S, E)
    h1 = x + ctx @ params["wo"]
    h2 = rmsnorm(h1, params["n2w"])
    a = h2 @ params["w1"]
    b = h2 @ params["w2"]
    return h1 + (jax.nn.silu(a) * b) @ params["w3"]


# ------------------------------- main ------------------------------------------

if __name__ == "__main__":
    B, S = 2, 8
    emb_dim, hidden_dim = 32, 64
    n_heads, n_kv_groups = 4, 2
    head_dim = emb_dim // n_heads
    dtype = jnp.float32

    key = jax.random.PRNGKey(0)
    ks = jax.random.split(key, 10)

    params = {
        # RMSNorm weights kept 2-D (1, E) for clean TPU layout
        "n1w": (1.0 + 0.1 * jax.random.normal(ks[0], (1, emb_dim))).astype(dtype),
        "n2w": (1.0 + 0.1 * jax.random.normal(ks[1], (1, emb_dim))).astype(dtype),
        # linear weights pre-transposed to (in, out)
        "wq": (0.05 * jax.random.normal(ks[2], (emb_dim, emb_dim))).astype(dtype),
        "wk": (0.05 * jax.random.normal(ks[3], (emb_dim, n_kv_groups * head_dim))).astype(dtype),
        "wv": (0.05 * jax.random.normal(ks[4], (emb_dim, n_kv_groups * head_dim))).astype(dtype),
        "wo": (0.05 * jax.random.normal(ks[5], (emb_dim, emb_dim))).astype(dtype),
        "w1": (0.05 * jax.random.normal(ks[6], (emb_dim, hidden_dim))).astype(dtype),
        "w2": (0.05 * jax.random.normal(ks[7], (emb_dim, hidden_dim))).astype(dtype),
        "w3": (0.05 * jax.random.normal(ks[8], (hidden_dim, emb_dim))).astype(dtype),
    }

    # RoPE tables (rotate-half convention: cos/sin duplicated across the two halves)
    inv_freq = 1.0 / (10000.0 ** (jnp.arange(0, head_dim, 2, dtype=jnp.float32) / head_dim))
    angles = jnp.arange(S, dtype=jnp.float32)[:, None] * inv_freq[None, :]   # (S, hd/2)
    cos = jnp.concatenate([jnp.cos(angles), jnp.cos(angles)], axis=-1).astype(dtype)  # (S, hd)
    sin = jnp.concatenate([jnp.sin(angles), jnp.sin(angles)], axis=-1).astype(dtype)  # (S, hd)

    x = jax.random.normal(ks[9], (B, S, emb_dim), dtype=dtype)

    ref = reference_block(x, params, cos, sin,
                          num_heads=n_heads, num_kv_groups=n_kv_groups)

    # f32 MXU operands (matches the PyTorch f32 module closely)
    out = transformer_block(x, params, cos, sin,
                            num_heads=n_heads, num_kv_groups=n_kv_groups,
                            compute_dtype=jnp.float32)
    out = jax.block_until_ready(out)
    assert out.shape == (B, S, emb_dim)
    err_f32 = float(jnp.max(jnp.abs(out - ref)))
    assert err_f32 < 2e-3, err_f32

    # bf16 MXU operands (fast-MXU path recommended by the perf review), f32 accumulation
    out_bf16 = transformer_block(x, params, cos, sin,
                                 num_heads=n_heads, num_kv_groups=n_kv_groups,
                                 compute_dtype=jnp.bfloat16)
    out_bf16 = jax.block_until_ready(out_bf16)
    err_bf16 = float(jnp.max(jnp.abs(out_bf16 - ref)))
    assert err_bf16 < 3e-2, err_bf16

    print("KERNEL_OK")
</pallas_src>

<mosaic_0001>
module attributes {stable_mosaic.version = 11 : i64} {
  func.func @transformer_block_kernel(%arg0: i32, %arg1: memref<1x8x32xf32, #tpu.memory_space<vmem>>, %arg2: memref<1x32xf32, #tpu.memory_space<vmem>>, %arg3: memref<32x32xf32, #tpu.memory_space<vmem>>, %arg4: memref<32x16xf32, #tpu.memory_space<vmem>>, %arg5: memref<32x16xf32, #tpu.memory_space<vmem>>, %arg6: memref<32x32xf32, #tpu.memory_space<vmem>>, %arg7: memref<1x32xf32, #tpu.memory_space<vmem>>, %arg8: memref<32x64xf32, #tpu.memory_space<vmem>>, %arg9: memref<32x64xf32, #tpu.memory_space<vmem>>, %arg10: memref<64x32xf32, #tpu.memory_space<vmem>>, %arg11: memref<8x8xf32, #tpu.memory_space<vmem>>, %arg12: memref<8x8xf32, #tpu.memory_space<vmem>>, %arg13: memref<1x8x32xf32, #tpu.memory_space<vmem>>, %arg14: memref<8x32xf32, #tpu.memory_space<vmem>>) attributes {dimension_semantics = [#tpu.dimension_semantics<parallel>], iteration_bounds = array<i64: 2>, scalar_prefetch = 0 : i64, scratch_operands = 1 : i64, tpu.core_type = #tpu.core_type<tc>, window_params = [{transform_indices = @transform_0, window_bounds = array<i64: 1, 8, 32>}, {pipeline_mode = #tpu.pipeline_mode<synchronous>, transform_indices = @transform_1, window_bounds = array<i64: 1, 32>}, {pipeline_mode = #tpu.pipeline_mode<synchronous>, transform_indices = @transform_2, window_bounds = array<i64: 32, 32>}, {pipeline_mode = #tpu.pipeline_mode<synchronous>, transform_indices = @transform_3, window_bounds = array<i64: 32, 16>}, {pipeline_mode = #tpu.pipeline_mode<synchronous>, transform_indices = @transform_4, window_bounds = array<i64: 32, 16>}, {pipeline_mode = #tpu.pipeline_mode<synchronous>, transform_indices = @transform_5, window_bounds = array<i64: 32, 32>}, {pipeline_mode = #tpu.pipeline_mode<synchronous>, transform_indices = @transform_6, window_bounds = array<i64: 1, 32>}, {pipeline_mode = #tpu.pipeline_mode<synchronous>, transform_indices = @transform_7, window_bounds = array<i64: 32, 64>}, {pipeline_mode = #tpu.pipeline_mode<synchronous>, transform_indices = @transform_8, window_bounds = array<i64: 32, 64>}, {pipeline_mode = #tpu.pipeline_mode<synchronous>, transform_indices = @transform_9, window_bounds = array<i64: 64, 32>}, {pipeline_mode = #tpu.pipeline_mode<synchronous>, transform_indices = @transform_10, window_bounds = array<i64: 8, 8>}, {pipeline_mode = #tpu.pipeline_mode<synchronous>, transform_indices = @transform_11, window_bounds = array<i64: 8, 8>}, {transform_indices = @transform_12, window_bounds = array<i64: 1, 8, 32>}]} {
    %c0 = arith.constant 0 : index
    %c0_0 = arith.constant 0 : index
    %c0_1 = arith.constant 0 : index
    %0 = vector.load %arg1[%c0, %c0_0, %c0_1] : memref<1x8x32xf32, #tpu.memory_space<vmem>>, vector<1x8x32xf32>
    %1 = vector.shape_cast %0 : vector<1x8x32xf32> to vector<8x32xf32>
    %2 = arith.mulf %1, %1 : vector<8x32xf32>
    %cst = arith.constant dense<0.000000e+00> : vector<8xf32>
    %3 = vector.multi_reduction <add>, %2, %cst [1] : vector<8x32xf32> to vector<8xf32>
    %4 = vector.shape_cast %3 : vector<8xf32> to vector<8x1xf32>
    %cst_2 = arith.constant 3.200000e+01 : f32
    %5 = vector.broadcast %cst_2 : f32 to vector<8x1xf32>
    %6 = arith.divf %4, %5 : vector<8x1xf32>
    %cst_3 = arith.constant 9.99999974E-6 : f32
    %7 = vector.broadcast %cst_3 : f32 to vector<8x1xf32>
    %8 = arith.addf %6, %7 : vector<8x1xf32>
    %9 = math.rsqrt %8 : vector<8x1xf32>
    %10 = vector.broadcast %9 : vector<8x1xf32> to vector<8x32xf32>
    %11 = arith.mulf %1, %10 : vector<8x32xf32>
    %c0_4 = arith.constant 0 : index
    %c0_5 = arith.constant 0 : index
    %12 = vector.load %arg2[%c0_4, %c0_5] : memref<1x32xf32, #tpu.memory_space<vmem>>, vector<1x32xf32>
    %13 = vector.broadcast %12 : vector<1x32xf32> to vector<8x32xf32>
    %14 = arith.mulf %11, %13 : vector<8x32xf32>
    %c0_6 = arith.constant 0 : index
    %c0_7 = arith.constant 0 : index
    %15 = vector.load %arg3[%c0_6, %c0_7] : memref<32x32xf32, #tpu.memory_space<vmem>>, vector<32x32xf32>
    %cst_8 = arith.constant dense<0.000000e+00> : vector<8x32xf32>
    %16 = tpu.matmul %14, %15, %cst_8 {dimension_numbers = #tpu.dot_dimension_numbers<[1], [0], [0], [1], [0, 0, 1, 1], [], []>} : vector<8x32xf32>, vector<32x32xf32>, vector<8x32xf32> -> vector<8x32xf32>
    %c0_9 = arith.constant 0 : index
    %c0_10 = arith.constant 0 : index
    %17 = vector.load %arg4[%c0_9, %c0_10] : memref<32x16xf32, #tpu.memory_space<vmem>>, vector<32x16xf32>
    %cst_11 = arith.constant dense<0.000000e+00> : vector<8x16xf32>
    %18 = tpu.matmul %14, %17, %cst_11 {dimension_numbers = #tpu.dot_dimension_numbers<[1], [0], [0], [1], [0, 0, 1, 1], [], []>} : vector<8x32xf32>, vector<32x16xf32>, vector<8x16xf32> -> vector<8x16xf32>
    %c0_12 = arith.constant 0 : index
    %c0_13 = arith.constant 0 : index
    %19 = vector.load %arg5[%c0_12, %c0_13] : memref<32x16xf32, #tpu.memory_space<vmem>>, vector<32x16xf32>
    %cst_14 = arith.constant dense<0.000000e+00> : vector<8x16xf32>
    %20 = tpu.matmul %14, %19, %cst_14 {dimension_numbers = #tpu.dot_dimension_numbers<[1], [0], [0], [1], [0, 0, 1, 1], [], []>} : vector<8x32xf32>, vector<32x16xf32>, vector<8x16xf32> -> vector<8x16xf32>
    %21 = vector.extract_strided_slice %16 {offsets = [0, 0], sizes = [8, 8], strides = [1, 1]} : vector<8x32xf32> to vector<8x8xf32>
    %22 = vector.extract_strided_slice %16 {offsets = [0, 8], sizes = [8, 8], strides = [1, 1]} : vector<8x32xf32> to vector<8x8xf32>
    %23 = vector.extract_strided_slice %16 {offsets = [0, 16], sizes = [8, 8], strides = [1, 1]} : vector<8x32xf32> to vector<8x8xf32>
    %24 = vector.extract_strided_slice %16 {offsets = [0, 24], sizes = [8, 8], strides = [1, 1]} : vector<8x32xf32> to vector<8x8xf32>
    %25 = vector.shape_cast %21 : vector<8x8xf32> to vector<1x8x8xf32>
    %26 = vector.shape_cast %22 : vector<8x8xf32> to vector<1x8x8xf32>
    %27 = vector.shape_cast %23 : vector<8x8xf32> to vector<1x8x8xf32>
    %28 = vector.shape_cast %24 : vector<8x8xf32> to vector<1x8x8xf32>
    %29 = tpu.concatenate %25, %26, %27, %28 in 0 : vector<1x8x8xf32>, vector<1x8x8xf32>, vector<1x8x8xf32>, vector<1x8x8xf32> -> vector<4x8x8xf32>
    %30 = vector.extract_strided_slice %18 {offsets = [0, 0], sizes = [8, 8], strides = [1, 1]} : vector<8x16xf32> to vector<8x8xf32>
    %31 = vector.extract_strided_slice %18 {offsets = [0, 8], sizes = [8, 8], strides = [1, 1]} : vector<8x16xf32> to vector<8x8xf32>
    %32 = vector.shape_cast %30 : vector<8x8xf32> to vector<1x8x8xf32>
    %33 = vector.shape_cast %31 : vector<8x8xf32> to vector<1x8x8xf32>
    %34 = tpu.concatenate %32, %33 in 0 : vector<1x8x8xf32>, vector<1x8x8xf32> -> vector<2x8x8xf32>
    %35 = vector.extract_strided_slice %20 {offsets = [0, 0], sizes = [8, 8], strides = [1, 1]} : vector<8x16xf32> to vector<8x8xf32>
    %36 = vector.extract_strided_slice %20 {offsets = [0, 8], sizes = [8, 8], strides = [1, 1]} : vector<8x16xf32> to vector<8x8xf32>
    %37 = vector.shape_cast %35 : vector<8x8xf32> to vector<1x8x8xf32>
    %38 = vector.shape_cast %36 : vector<8x8xf32> to vector<1x8x8xf32>
    %39 = tpu.concatenate %37, %38 in 0 : vector<1x8x8xf32>, vector<1x8x8xf32> -> vector<2x8x8xf32>
    %c0_15 = arith.constant 0 : index
    %c0_16 = arith.constant 0 : index
    %40 = vector.load %arg11[%c0_15, %c0_16] : memref<8x8xf32, #tpu.memory_space<vmem>>, vector<8x8xf32>
    %41 = vector.shape_cast %40 : vector<8x8xf32> to vector<1x8x8xf32>
    %c0_17 = arith.constant 0 : index
    %c0_18 = arith.constant 0 : index
    %42 = vector.load %arg12[%c0_17, %c0_18] : memref<8x8xf32, #tpu.memory_space<vmem>>, vector<8x8xf32>
    %43 = vector.shape_cast %42 : vector<8x8xf32> to vector<1x8x8xf32>
    %44 = vector.extract_strided_slice %29 {offsets = [0, 0, 4], sizes = [4, 8, 4], strides = [1, 1, 1]} : vector<4x8x8xf32> to vector<4x8x4xf32>
    %cst_19 = arith.constant 0.000000e+00 : f32
    %45 = vector.broadcast %cst_19 : f32 to vector<4x8x4xf32>
    %46 = arith.subf %45, %44 : vector<4x8x4xf32>
    %47 = vector.extract_strided_slice %29 {offsets = [0, 0, 0], sizes = [4, 8, 4], strides = [1, 1, 1]} : vector<4x8x8xf32> to vector<4x8x4xf32>
    %48 = tpu.concatenate %46, %47 in 2 : vector<4x8x4xf32>, vector<4x8x4xf32> -> vector<4x8x8xf32>
    %49 = vector.broadcast %41 : vector<1x8x8xf32> to vector<4x8x8xf32>
    %50 = arith.mulf %29, %49 : vector<4x8x8xf32>
    %51 = vector.broadcast %43 : vector<1x8x8xf32> to vector<4x8x8xf32>
    %52 = arith.mulf %48, %51 : vector<4x8x8xf32>
    %53 = arith.addf %50, %52 : vector<4x8x8xf32>
    %54 = vector.extract_strided_slice %34 {offsets = [0, 0, 4], sizes = [2, 8, 4], strides = [1, 1, 1]} : vector<2x8x8xf32> to vector<2x8x4xf32>
    %cst_20 = arith.constant 0.000000e+00 : f32
    %55 = vector.broadcast %cst_20 : f32 to vector<2x8x4xf32>
    %56 = arith.subf %55, %54 : vector<2x8x4xf32>
    %57 = vector.extract_strided_slice %34 {offsets = [0, 0, 0], sizes = [2, 8, 4], strides = [1, 1, 1]} : vector<2x8x8xf32> to vector<2x8x4xf32>
    %58 = tpu.concatenate %56, %57 in 2 : vector<2x8x4xf32>, vector<2x8x4xf32> -> vector<2x8x8xf32>
    %59 = vector.broadcast %41 : vector<1x8x8xf32> to vector<2x8x8xf32>
    %60 = arith.mulf %34, %59 : vector<2x8x8xf32>
    %61 = vector.broadcast %43 : vector<1x8x8xf32> to vector<2x8x8xf32>
    %62 = arith.mulf %58, %61 : vector<2x8x8xf32>
    %63 = arith.addf %60, %62 : vector<2x8x8xf32>
    %64 = vector.shape_cast %63 : vector<2x8x8xf32> to vector<2x1x8x8xf32>
    %65 = vector.shape_cast %64 : vector<2x1x8x8xf32> to vector<2x1x8x8xf32>
    %66 = vector.broadcast %65 : vector<2x1x8x8xf32> to vector<2x2x8x8xf32>
    %67 = vector.shape_cast %66 : vector<2x2x8x8xf32> to vector<4x8x8xf32>
    %68 = vector.shape_cast %39 : vector<2x8x8xf32> to vector<2x1x8x8xf32>
    %69 = vector.shape_cast %68 : vector<2x1x8x8xf32> to vector<2x1x8x8xf32>
    %70 = vector.broadcast %69 : vector<2x1x8x8xf32> to vector<2x2x8x8xf32>
    %71 = vector.shape_cast %70 : vector<2x2x8x8xf32> to vector<4x8x8xf32>
    %cst_21 = arith.constant dense<0.000000e+00> : vector<4x8x8xf32>
    %72 = tpu.matmul %53, %67, %cst_21 {dimension_numbers = #tpu.dot_dimension_numbers<[2], [2], [1], [1], [0, 0, 0, 1, 1, 1], [0], [0]>} : vector<4x8x8xf32>, vector<4x8x8xf32>, vector<4x8x8xf32> -> vector<4x8x8xf32>
    %cst_22 = arith.constant 0.353553385 : f32
    %73 = vector.broadcast %cst_22 : f32 to vector<4x8x8xf32>
    %74 = arith.mulf %72, %73 : vector<4x8x8xf32>
    %75 = tpu.iota {dimensions = array<i32: 0>} : vector<8x8xi32>
    %76 = tpu.iota {dimensions = array<i32: 1>} : vector<8x8xi32>
    %77 = arith.cmpi sle, %76, %75 : vector<8x8xi32>
    %78 = vector.shape_cast %77 : vector<8x8xi1> to vector<1x8x8xi1>
    %cst_23 = arith.constant 0xFF800000 : f32
    %79 = vector.shape_cast %78 : vector<1x8x8xi1> to vector<1x8x8xi1>
    %80 = vector.broadcast %79 : vector<1x8x8xi1> to vector<4x8x8xi1>
    %81 = vector.broadcast %cst_23 : f32 to vector<4x8x8xf32>
    %82 = arith.select %80, %74, %81 : vector<4x8x8xi1>, vector<4x8x8xf32>
    %cst_24 = arith.constant dense<0xFF800000> : vector<4x8xf32>
    %83 = vector.multi_reduction <maximumf>, %82, %cst_24 [2] : vector<4x8x8xf32> to vector<4x8xf32>
    %84 = vector.shape_cast %83 : vector<4x8xf32> to vector<4x8x1xf32>
    %85 = vector.broadcast %84 : vector<4x8x1xf32> to vector<4x8x8xf32>
    %86 = arith.subf %82, %85 : vector<4x8x8xf32>
    %87 = math.exp %86 : vector<4x8x8xf32>
    %cst_25 = arith.constant dense<0.000000e+00> : vector<4x8xf32>
    %88 = vector.multi_reduction <add>, %87, %cst_25 [2] : vector<4x8x8xf32> to vector<4x8xf32>
    %89 = vector.shape_cast %88 : vector<4x8xf32> to vector<4x8x1xf32>
    %90 = tpu.reciprocal %89 {approx = true} : vector<4x8x1xf32> -> vector<4x8x1xf32>
    %91 = vector.broadcast %90 : vector<4x8x1xf32> to vector<4x8x8xf32>
    %92 = arith.mulf %87, %91 : vector<4x8x8xf32>
    %cst_26 = arith.constant dense<0.000000e+00> : vector<4x8x8xf32>
    %93 = tpu.matmul %92, %71, %cst_26 {dimension_numbers = #tpu.dot_dimension_numbers<[2], [1], [1], [2], [0, 0, 0, 1, 1, 2], [0], [0]>} : vector<4x8x8xf32>, vector<4x8x8xf32>, vector<4x8x8xf32> -> vector<4x8x8xf32>
    %94 = vector.extract_strided_slice %93 {offsets = [0, 0, 0], sizes = [1, 8, 8], strides = [1, 1, 1]} : vector<4x8x8xf32> to vector<1x8x8xf32>
    %95 = vector.shape_cast %94 : vector<1x8x8xf32> to vector<8x8xf32>
    %c0_27 = arith.constant 0 : index
    %c0_28 = arith.constant 0 : index
    %96 = vector.load %arg14[%c0_27, %c0_28] : memref<8x32xf32, #tpu.memory_space<vmem>>, vector<8x8xf32>
    tpu.vector_store %arg14[%c0_27, %c0_28], %95 {strides = array<i32>} : memref<8x32xf32, #tpu.memory_space<vmem>>, vector<8x8xf32>,
    %97 = vector.extract_strided_slice %93 {offsets = [1, 0, 0], sizes = [1, 8, 8], strides = [1, 1, 1]} : vector<4x8x8xf32> to vector<1x8x8xf32>
    %98 = vector.shape_cast %97 : vector<1x8x8xf32> to vector<8x8xf32>
    %c0_29 = arith.constant 0 : index
    %c8 = arith.constant 8 : index
    %99 = vector.load %arg14[%c0_29, %c8] : memref<8x32xf32, #tpu.memory_space<vmem>>, vector<8x8xf32>
    tpu.vector_store %arg14[%c0_29, %c8], %98 {strides = array<i32>} : memref<8x32xf32, #tpu.memory_space<vmem>>, vector<8x8xf32>,
    %100 = vector.extract_strided_slice %93 {offsets = [2, 0, 0], sizes = [1, 8, 8], strides = [1, 1, 1]} : vector<4x8x8xf32> to vector<1x8x8xf32>
    %101 = vector.shape_cast %100 : vector<1x8x8xf32> to vector<8x8xf32>
    %c0_30 = arith.constant 0 : index
    %c16 = arith.constant 16 : index
    %102 = vector.load %arg14[%c0_30, %c16] : memref<8x32xf32, #tpu.memory_space<vmem>>, vector<8x8xf32>
    tpu.vector_store %arg14[%c0_30, %c16], %101 {strides = array<i32>} : memref<8x32xf32, #tpu.memory_space<vmem>>, vector<8x8xf32>,
    %103 = vector.extract_strided_slice %93 {offsets = [3, 0, 0], sizes = [1, 8, 8], strides = [1, 1, 1]} : vector<4x8x8xf32> to vector<1x8x8xf32>
    %104 = vector.shape_cast %103 : vector<1x8x8xf32> to vector<8x8xf32>
    %c0_31 = arith.constant 0 : index
    %c24 = arith.constant 24 : index
    %105 = vector.load %arg14[%c0_31, %c24] : memref<8x32xf32, #tpu.memory_space<vmem>>, vector<8x8xf32>
    tpu.vector_store %arg14[%c0_31, %c24], %104 {strides = array<i32>} : memref<8x32xf32, #tpu.memory_space<vmem>>, vector<8x8xf32>,
    %c0_32 = arith.constant 0 : index
    %c0_33 = arith.constant 0 : index
    %106 = vector.load %arg14[%c0_32, %c0_33] : memref<8x32xf32, #tpu.memory_space<vmem>>, vector<8x32xf32>
    %c0_34 = arith.constant 0 : index
    %c0_35 = arith.constant 0 : index
    %107 = vector.load %arg6[%c0_34, %c0_35] : memref<32x32xf32, #tpu.memory_space<vmem>>, vector<32x32xf32>
    %cst_36 = arith.constant dense<0.000000e+00> : vector<8x32xf32>
    %108 = tpu.matmul %106, %107, %cst_36 {dimension_numbers = #tpu.dot_dimension_numbers<[1], [0], [0], [1], [0, 0, 1, 1], [], []>} : vector<8x32xf32>, vector<32x32xf32>, vector<8x32xf32> -> vector<8x32xf32>
    %109 = arith.addf %1, %108 : vector<8x32xf32>
    %110 = arith.mulf %109, %109 : vector<8x32xf32>
    %cst_37 = arith.constant dense<0.000000e+00> : vector<8xf32>
    %111 = vector.multi_reduction <add>, %110, %cst_37 [1] : vector<8x32xf32> to vector<8xf32>
    %112 = vector.shape_cast %111 : vector<8xf32> to vector<8x1xf32>
    %cst_38 = arith.constant 3.200000e+01 : f32
    %113 = vector.broadcast %cst_38 : f32 to vector<8x1xf32>
    %114 = arith.divf %112, %113 : vector<8x1xf32>
    %cst_39 = arith.constant 9.99999974E-6 : f32
    %115 = vector.broadcast %cst_39 : f32 to vector<8x1xf32>
    %116 = arith.addf %114, %115 : vector<8x1xf32>
    %117 = math.rsqrt %116 : vector<8x1xf32>
    %118 = vector.broadcast %117 : vector<8x1xf32> to vector<8x32xf32>
    %119 = arith.mulf %109, %118 : vector<8x32xf32>
    %c0_40 = arith.constant 0 : index
    %c0_41 = arith.constant 0 : index
    %120 = vector.load %arg7[%c0_40, %c0_41] : memref<1x32xf32, #tpu.memory_space<vmem>>, vector<1x32xf32>
    %121 = vector.broadcast %120 : vector<1x32xf32> to vector<8x32xf32>
    %122 = arith.mulf %119, %121 : vector<8x32xf32>
    %c0_42 = arith.constant 0 : index
    %c0_43 = arith.constant 0 : index
    %123 = vector.load %arg8[%c0_42, %c0_43] : memref<32x64xf32, #tpu.memory_space<vmem>>, vector<32x64xf32>
    %cst_44 = arith.constant dense<0.000000e+00> : vector<8x64xf32>
    %124 = tpu.matmul %122, %123, %cst_44 {dimension_numbers = #tpu.dot_dimension_numbers<[1], [0], [0], [1], [0, 0, 1, 1], [], []>} : vector<8x32xf32>, vector<32x64xf32>, vector<8x64xf32> -> vector<8x64xf32>
    %c0_45 = arith.constant 0 : index
    %c0_46 = arith.constant 0 : index
    %125 = vector.load %arg9[%c0_45, %c0_46] : memref<32x64xf32, #tpu.memory_space<vmem>>, vector<32x64xf32>
    %cst_47 = arith.constant dense<0.000000e+00> : vector<8x64xf32>
    %126 = tpu.matmul %122, %125, %cst_47 {dimension_numbers = #tpu.dot_dimension_numbers<[1], [0], [0], [1], [0, 0, 1, 1], [], []>} : vector<8x32xf32>, vector<32x64xf32>, vector<8x64xf32> -> vector<8x64xf32>
    %127 = arith.negf %124 : vector<8x64xf32>
    %128 = math.exp %127 : vector<8x64xf32>
    %cst_48 = arith.constant 1.000000e+00 : f32
    %129 = vector.broadcast %cst_48 : f32 to vector<8x64xf32>
    %130 = arith.addf %129, %128 : vector<8x64xf32>
    %131 = arith.divf %129, %130 : vector<8x64xf32>
    %132 = arith.mulf %124, %131 : vector<8x64xf32>
    %133 = arith.mulf %132, %126 : vector<8x64xf32>
    %c0_49 = arith.constant 0 : index
    %c0_50 = arith.constant 0 : index
    %134 = vector.load %arg10[%c0_49, %c0_50] : memref<64x32xf32, #tpu.memory_space<vmem>>, vector<64x32xf32>
    %cst_51 = arith.constant dense<0.000000e+00> : vector<8x32xf32>
    %135 = tpu.matmul %133, %134, %cst_51 {dimension_numbers = #tpu.dot_dimension_numbers<[1], [0], [0], [1], [0, 0, 1, 1], [], []>} : vector<8x64xf32>, vector<64x32xf32>, vector<8x32xf32> -> vector<8x32xf32>
    %136 = arith.addf %109, %135 : vector<8x32xf32>
    %c0_52 = arith.constant 0 : index
    %c0_53 = arith.constant 0 : index
    %c0_54 = arith.constant 0 : index
    %137 = vector.load %arg13[%c0_52, %c0_53, %c0_54] : memref<1x8x32xf32, #tpu.memory_space<vmem>>, vector<1x8x32xf32>
    %138 = vector.shape_cast %137 : vector<1x8x32xf32> to vector<8x32xf32>
    %139 = vector.shape_cast %136 : vector<8x32xf32> to vector<1x8x32xf32>
    tpu.vector_store %arg13[%c0_52, %c0_53, %c0_54], %139 {strides = array<i32>} : memref<1x8x32xf32, #tpu.memory_space<vmem>>, vector<1x8x32xf32>,
    return
  }
  func.func @transform_0(%arg0: i32) -> (i32, i32, i32) {
    %c0_i32 = arith.constant 0 : i32
    %c0_i32_0 = arith.constant 0 : i32
    %c0_i32_1 = arith.constant 0 : i32
    return %arg0, %c0_i32, %c0_i32_0 : i32, i32, i32
  }
  func.func @transform_1(%arg0: i32) -> (i32, i32) {
    %c0_i32 = arith.constant 0 : i32
    %c0_i32_0 = arith.constant 0 : i32
    %c0_i32_1 = arith.constant 0 : i32
    return %c0_i32, %c0_i32_0 : i32, i32
  }
  func.func @transform_2(%arg0: i32) -> (i32, i32) {
    %c0_i32 = arith.constant 0 : i32
    %c0_i32_0 = arith.constant 0 : i32
    %c0_i32_1 = arith.constant 0 : i32
    return %c0_i32, %c0_i32_0 : i32, i32
  }
  func.func @transform_3(%arg0: i32) -> (i32, i32) {
    %c0_i32 = arith.constant 0 : i32
    %c0_i32_0 = arith.constant 0 : i32
    %c0_i32_1 = arith.constant 0 : i32
    return %c0_i32, %c0_i32_0 : i32, i32
  }
  func.func @transform_4(%arg0: i32) -> (i32, i32) {
    %c0_i32 = arith.constant 0 : i32
    %c0_i32_0 = arith.constant 0 : i32
    %c0_i32_1 = arith.constant 0 : i32
    return %c0_i32, %c0_i32_0 : i32, i32
  }
  func.func @transform_5(%arg0: i32) -> (i32, i32) {
    %c0_i32 = arith.constant 0 : i32
    %c0_i32_0 = arith.constant 0 : i32
    %c0_i32_1 = arith.constant 0 : i32
    return %c0_i32, %c0_i32_0 : i32, i32
  }
  func.func @transform_6(%arg0: i32) -> (i32, i32) {
    %c0_i32 = arith.constant 0 : i32
    %c0_i32_0 = arith.constant 0 : i32
    %c0_i32_1 = arith.constant 0 : i32
    return %c0_i32, %c0_i32_0 : i32, i32
  }
  func.func @transform_7(%arg0: i32) -> (i32, i32) {
    %c0_i32 = arith.constant 0 : i32
    %c0_i32_0 = arith.constant 0 : i32
    %c0_i32_1 = arith.constant 0 : i32
    return %c0_i32, %c0_i32_0 : i32, i32
  }
  func.func @transform_8(%arg0: i32) -> (i32, i32) {
    %c0_i32 = arith.constant 0 : i32
    %c0_i32_0 = arith.constant 0 : i32
    %c0_i32_1 = arith.constant 0 : i32
    return %c0_i32, %c0_i32_0 : i32, i32
  }
  func.func @transform_9(%arg0: i32) -> (i32, i32) {
    %c0_i32 = arith.constant 0 : i32
    %c0_i32_0 = arith.constant 0 : i32
    %c0_i32_1 = arith.constant 0 : i32
    return %c0_i32, %c0_i32_0 : i32, i32
  }
  func.func @transform_10(%arg0: i32) -> (i32, i32) {
    %c0_i32 = arith.constant 0 : i32
    %c0_i32_0 = arith.constant 0 : i32
    %c0_i32_1 = arith.constant 0 : i32
    return %c0_i32, %c0_i32_0 : i32, i32
  }
  func.func @transform_11(%arg0: i32) -> (i32, i32) {
    %c0_i32 = arith.constant 0 : i32
    %c0_i32_0 = arith.constant 0 : i32
    %c0_i32_1 = arith.constant 0 : i32
    return %c0_i32, %c0_i32_0 : i32, i32
  }
  func.func @transform_12(%arg0: i32) -> (i32, i32, i32) {
    %c0_i32 = arith.constant 0 : i32
    %c0_i32_0 = arith.constant 0 : i32
    %c0_i32_1 = arith.constant 0 : i32
    return %arg0, %c0_i32, %c0_i32_0 : i32, i32, i32
  }
}

</mosaic_0001>

<llo_original>
// kernel: tpu_custom_call.1
$region0: #{tpu_custom_call.1}
  #allocation0 [shape = 'u32[]', space=smem, size = 0x4, offset = 0x4, fixed_abs, tag = 'smem constant byte address 0x4 - core index']
  #allocation1 [shape = 'u32[144,128]{1,0:T(1,128)}', space=vmem, size = 0x12000, scoped, tag = 'internal scratch']
  #allocation2 [shape = 'f32[8,32]{1,0:T(8,128)}', space=vmem, size = 0x1000, scoped, tag = 'scratch operand']
  %s0 = inlined_call_operand.vmem [shape: f32[2,8,32], index: 0, kind: input, shape index: {}]
  %s1 = inlined_call_operand.vmem [shape: f32[1,32], index: 1, kind: input, shape index: {}]
  %s2 = inlined_call_operand.vmem [shape: f32[32,32], index: 2, kind: input, shape index: {}]
  %s3 = inlined_call_operand.vmem [shape: f32[32,16], index: 3, kind: input, shape index: {}]
  %s4 = inlined_call_operand.vmem [shape: f32[32,16], index: 4, kind: input, shape index: {}]
  %s5 = inlined_call_operand.vmem [shape: f32[32,32], index: 5, kind: input, shape index: {}]
  %s6 = inlined_call_operand.vmem [shape: f32[1,32], index: 6, kind: input, shape index: {}]
  %s7 = inlined_call_operand.vmem [shape: f32[32,64], index: 7, kind: input, shape index: {}]
  %s8 = inlined_call_operand.vmem [shape: f32[32,64], index: 8, kind: input, shape index: {}]
  %s9 = inlined_call_operand.vmem [shape: f32[64,32], index: 9, kind: input, shape index: {}]
  %s10 = inlined_call_operand.vmem [shape: f32[8,8], index: 10, kind: input, shape index: {}]
  %s11 = inlined_call_operand.vmem [shape: f32[8,8], index: 11, kind: input, shape index: {}]
  %s12 = inlined_call_operand.hbm [shape: f32[2,8,32], index: 12, kind: output, shape index: {}]
  %s13 = sld [smem:[#allocation0]]
  $region81: #{tpu_custom_call.1} parent=0
    _
  %s15 = ssub.s32 1, %s13
  %s16 = scalar_select 0, %s15, %s13
  $region1: #{tpu_custom_call.1} parent=0
    #allocation3 [shape = 'u8[8192]{0}', space=vmem, size = 0x2000, scoped, tag = 'output window, operand 0']
    #allocation4 [shape = 's32[2]{0}', space=sflag, size = 0x8, scoped, tag = 'scoped memory for tpu_custom_call.1']
    %17 = vsyncpa [#allocation4], 0
    %s18 = scalar_lea.sflag [#allocation4], 1
    %19 = vsyncpa %s18, 0
    loop: start=0, step=1, limit=4
    $region2: #{tpu_custom_call.1} parent=1 // loop_pre_header
      _
    $region3: #{tpu_custom_call.1} parent=1 // loop_header
      %s21 = sphi 0, %s25
      %p22 = scmp.ge.s32.totalorder %s21, 4
      %s31 = sphi 0, %s33
      %s34 = sphi 0, %s31
      %s35 = sphi 0, %s34
      %s51 = sphi 0, %s35
      %s55 = sphi 0, %s55
      %s57 = sphi 0, %s55
      %s58 = sphi 0, %s57
      %s72 = sphi 0, %s58
      %s76 = sphi 0, %s76
      %s78 = sphi 0, %s76
      %s79 = sphi 0, %s78
      %s93 = sphi 0, %s79
      %s97 = sphi 0, %s97
      %s99 = sphi 0, %s97
      %s100 = sphi 0, %s99
      %s114 = sphi 0, %s100
      %s118 = sphi 0, %s118
      %s120 = sphi 0, %s118
      %s121 = sphi 0, %s120
      %s135 = sphi 0, %s121
      %s139 = sphi 0, %s139
      %s141 = sphi 0, %s139
      %s142 = sphi 0, %s141
      %s156 = sphi 0, %s142
      %s160 = sphi 0, %s160
      %s162 = sphi 0, %s160
      %s163 = sphi 0, %s162
      %s177 = sphi 0, %s163
      %s181 = sphi 0, %s181
      %s183 = sphi 0, %s181
      %s184 = sphi 0, %s183
      %s198 = sphi 0, %s184
      %s202 = sphi 0, %s202
      %s204 = sphi 0, %s202
      %s205 = sphi 0, %s204
      %s219 = sphi 0, %s205
      %s223 = sphi 0, %s223
      %s225 = sphi 0, %s223
      %s226 = sphi 0, %s225
      %s240 = sphi 0, %s226
      %s244 = sphi 0, %s244
      %s246 = sphi 0, %s244
      %s247 = sphi 0, %s246
      %s261 = sphi 0, %s247
      %s265 = sphi 0, %s265
      %s267 = sphi 0, %s265
      %s268 = sphi 0, %s267
      %s282 = sphi 0, %s268
      %s288 = sphi 0, %s290
      %s291 = sphi 0, %s288
      %s292 = sphi 0, %s291
      %s308 = sphi 0, %s292
    $region4: #{tpu_custom_call.1} parent=1 // loop_header_branch
      %24 = sbr.rel (%p22) target = $region8
    $region5: #{tpu_custom_call.1} parent=1 // loop_body
      %s26 = ssub.s32 %s21, 1
      %s27 = ssub.s32 %s21, 2
      %s28 = sadd.s32 %s21, 1
      %s29 = ssub.s32 %s21, %s28
      %p30 = scmp.eq.s32.totalorder %s29, 0
      %s32 = sadd.s32 %s31, 1
      %s33 = scalar_select %p30, %s31, %s32
      %p36 = pneg %p30
      %p37 = scmp.eq.s32.totalorder %s21, 1
      %p38 = por %p36, %p37
      %p39 = scmp.ne.s32.totalorder %s31, %s34
      %p40 = scmp.eq.s32.totalorder %s21, 0
      %p41 = por %p39, %p40
      %p42 = scmp.ne.s32.totalorder %s31, %s34
      %p43 = scmp.eq.s32.totalorder %s26, 1
      %p44 = por %p42, %p43
      %p45 = scmp.ne.s32.totalorder %s34, %s35
      %p46 = scmp.eq.s32.totalorder %s26, 0
      %p47 = por %p45, %p46
      %p48 = scmp.ne.s32.totalorder %s34, %s35
      %p49 = scmp.eq.s32.totalorder %s27, 1
      %p50 = por %p48, %p49
      %p52 = scmp.ne.s32.totalorder %s35, %s51
      %p53 = scmp.eq.s32.totalorder %s27, 0
      %p54 = por %p52, %p53
      %s56 = sadd.s32 %s55, 1
      %p59 = scmp.eq.s32.totalorder %s21, 1
      %p60 = scmp.ne.s32.totalorder %s55, %s57
      %p61 = scmp.eq.s32.totalorder %s21, 0
      %p62 = por %p60, %p61
      %p63 = scmp.ne.s32.totalorder %s55, %s57
      %p64 = scmp.eq.s32.totalorder %s26, 1
      %p65 = por %p63, %p64
      %p66 = scmp.ne.s32.totalorder %s57, %s58
      %p67 = scmp.eq.s32.totalorder %s26, 0
      %p68 = por %p66, %p67
      %p69 = scmp.ne.s32.totalorder %s57, %s58
      %p70 = scmp.eq.s32.totalorder %s27, 1
      %p71 = por %p69, %p70
      %p73 = scmp.ne.s32.totalorder %s58, %s72
      %p74 = scmp.eq.s32.totalorder %s27, 0
      %p75 = por %p73, %p74
      %s77 = sadd.s32 %s76, 1
      %p80 = scmp.eq.s32.totalorder %s21, 1
      %p81 = scmp.ne.s32.totalorder %s76, %s78
      %p82 = scmp.eq.s32.totalorder %s21, 0
      %p83 = por %p81, %p82
      %p84 = scmp.ne.s32.totalorder %s76, %s78
      %p85 = scmp.eq.s32.totalorder %s26, 1
      %p86 = por %p84, %p85
      %p87 = scmp.ne.s32.totalorder %s78, %s79
      %p88 = scmp.eq.s32.totalorder %s26, 0
      %p89 = por %p87, %p88
      %p90 = scmp.ne.s32.totalorder %s78, %s79
      %p91 = scmp.eq.s32.totalorder %s27, 1
      %p92 = por %p90, %p91
      %p94 = scmp.ne.s32.totalorder %s79, %s93
      %p95 = scmp.eq.s32.totalorder %s27, 0
      %p96 = por %p94, %p95
      %s98 = sadd.s32 %s97, 1
      %p101 = scmp.eq.s32.totalorder %s21, 1
      %p102 = scmp.ne.s32.totalorder %s97, %s99
      %p103 = scmp.eq.s32.totalorder %s21, 0
      %p104 = por %p102, %p103
      %p105 = scmp.ne.s32.totalorder %s97, %s99
      %p106 = scmp.eq.s32.totalorder %s26, 1
      %p107 = por %p105, %p106
      %p108 = scmp.ne.s32.totalorder %s99, %s100
      %p109 = scmp.eq.s32.totalorder %s26, 0
      %p110 = por %p108, %p109
      %p111 = scmp.ne.s32.totalorder %s99, %s100
      %p112 = scmp.eq.s32.totalorder %s27, 1
      %p113 = por %p111, %p112
      %p115 = scmp.ne.s32.totalorder %s100, %s114
      %p116 = scmp.eq.s32.totalorder %s27, 0
      %p117 = por %p115, %p116
      %s119 = sadd.s32 %s118, 1
      %p122 = scmp.eq.s32.totalorder %s21, 1
      %p123 = scmp.ne.s32.totalorder %s118, %s120
      %p124 = scmp.eq.s32.totalorder %s21, 0
      %p125 = por %p123, %p124
      %p126 = scmp.ne.s32.totalorder %s118, %s120
      %p127 = scmp.eq.s32.totalorder %s26, 1
      %p128 = por %p126, %p127
      %p129 = scmp.ne.s32.totalorder %s120, %s121
      %p130 = scmp.eq.s32.totalorder %s26, 0
      %p131 = por %p129, %p130
      %p132 = scmp.ne.s32.totalorder %s120, %s121
      %p133 = scmp.eq.s32.totalorder %s27, 1
      %p134 = por %p132, %p133
      %p136 = scmp.ne.s32.totalorder %s121, %s135
      %p137 = scmp.eq.s32.totalorder %s27, 0
      %p138 = por %p136, %p137
      %s140 = sadd.s32 %s139, 1
      %p143 = scmp.eq.s32.totalorder %s21, 1
      %p144 = scmp.ne.s32.totalorder %s139, %s141
      %p145 = scmp.eq.s32.totalorder %s21, 0
      %p146 = por %p144, %p145
      %p147 = scmp.ne.s32.totalorder %s139, %s141
      %p148 = scmp.eq.s32.totalorder %s26, 1
      %p149 = por %p147, %p148
      %p150 = scmp.ne.s32.totalorder %s141, %s142
      %p151 = scmp.eq.s32.totalorder %s26, 0
      %p152 = por %p150, %p151
      %p153 = scmp.ne.s32.totalorder %s141, %s142
      %p154 = scmp.eq.s32.totalorder %s27, 1
      %p155 = por %p153, %p154
      %p157 = scmp.ne.s32.totalorder %s142, %s156
      %p158 = scmp.eq.s32.totalorder %s27, 0
      %p159 = por %p157, %p158
      %s161 = sadd.s32 %s160, 1
      %p164 = scmp.eq.s32.totalorder %s21, 1
      %p165 = scmp.ne.s32.totalorder %s160, %s162
      %p166 = scmp.eq.s32.totalorder %s21, 0
      %p167 = por %p165, %p166
      %p168 = scmp.ne.s32.totalorder %s160, %s162
      %p169 = scmp.eq.s32.totalorder %s26, 1
      %p170 = por %p168, %p169
      %p171 = scmp.ne.s32.totalorder %s162, %s163
      %p172 = scmp.eq.s32.totalorder %s26, 0
      %p173 = por %p171, %p172
      %p174 = scmp.ne.s32.totalorder %s162, %s163
      %p175 = scmp.eq.s32.totalorder %s27, 1
      %p176 = por %p174, %p175
      %p178 = scmp.ne.s32.totalorder %s163, %s177
      %p179 = scmp.eq.s32.totalorder %s27, 0
      %p180 = por %p178, %p179
      %s182 = sadd.s32 %s181, 1
      %p185 = scmp.eq.s32.totalorder %s21, 1
      %p186 = scmp.ne.s32.totalorder %s181, %s183
      %p187 = scmp.eq.s32.totalorder %s21, 0
      %p188 = por %p186, %p187
      %p189 = scmp.ne.s32.totalorder %s181, %s183
      %p190 = scmp.eq.s32.totalorder %s26, 1
      %p191 = por %p189, %p190
      %p192 = scmp.ne.s32.totalorder %s183, %s184
      %p193 = scmp.eq.s32.totalorder %s26, 0
      %p194 = por %p192, %p193
      %p195 = scmp.ne.s32.totalorder %s183, %s184
      %p196 = scmp.eq.s32.totalorder %s27, 1
      %p197 = por %p195, %p196
      %p199 = scmp.ne.s32.totalorder %s184, %s198
      %p200 = scmp.eq.s32.totalorder %s27, 0
      %p201 = por %p199, %p200
      %s203 = sadd.s32 %s202, 1
      %p206 = scmp.eq.s32.totalorder %s21, 1
      %p207 = scmp.ne.s32.totalorder %s202, %s204
      %p208 = scmp.eq.s32.totalorder %s21, 0
      %p209 = por %p207, %p208
      %p210 = scmp.ne.s32.totalorder %s202, %s204
      %p211 = scmp.eq.s32.totalorder %s26, 1
      %p212 = por %p210, %p211
      %p213 = scmp.ne.s32.totalorder %s204, %s205
      %p214 = scmp.eq.s32.totalorder %s26, 0
      %p215 = por %p213, %p214
      %p216 = scmp.ne.s32.totalorder %s204, %s205
      %p217 = scmp.eq.s32.totalorder %s27, 1
      %p218 = por %p216, %p217
      %p220 = scmp.ne.s32.totalorder %s205, %s219
      %p221 = scmp.eq.s32.totalorder %s27, 0
      %p222 = por %p220, %p221
      %s224 = sadd.s32 %s223, 1
      %p227 = scmp.eq.s32.totalorder %s21, 1
      %p228 = scmp.ne.s32.totalorder %s223, %s225
      %p229 = scmp.eq.s32.totalorder %s21, 0
      %p230 = por %p228, %p229
      %p231 = scmp.ne.s32.totalorder %s223, %s225
      %p232 = scmp.eq.s32.totalorder %s26, 1
      %p233 = por %p231, %p232
      %p234 = scmp.ne.s32.totalorder %s225, %s226
      %p235 = scmp.eq.s32.totalorder %s26, 0
      %p236 = por %p234, %p235
      %p237 = scmp.ne.s32.totalorder %s225, %s226
      %p238 = scmp.eq.s32.totalorder %s27, 1
      %p239 = por %p237, %p238
      %p241 = scmp.ne.s32.totalorder %s226, %s240
      %p242 = scmp.eq.s32.totalorder %s27, 0
      %p243 = por %p241, %p242
      %s245 = sadd.s32 %s244, 1
      %p248 = scmp.eq.s32.totalorder %s21, 1
      %p249 = scmp.ne.s32.totalorder %s244, %s246
      %p250 = scmp.eq.s32.totalorder %s21, 0
      %p251 = por %p249, %p250
      %p252 = scmp.ne.s32.totalorder %s244, %s246
      %p253 = scmp.eq.s32.totalorder %s26, 1
      %p254 = por %p252, %p253
      %p255 = scmp.ne.s32.totalorder %s246, %s247
      %p256 = scmp.eq.s32.totalorder %s26, 0
      %p257 = por %p255, %p256
      %p258 = scmp.ne.s32.totalorder %s246, %s247
      %p259 = scmp.eq.s32.totalorder %s27, 1
      %p260 = por %p258, %p259
      %p262 = scmp.ne.s32.totalorder %s247, %s261
      %p263 = scmp.eq.s32.totalorder %s27, 0
      %p264 = por %p262, %p263
      %s266 = sadd.s32 %s265, 1
      %p269 = scmp.eq.s32.totalorder %s21, 1
      %p270 = scmp.ne.s32.totalorder %s265, %s267
      %p271 = scmp.eq.s32.totalorder %s21, 0
      %p272 = por %p270, %p271
      %p273 = scmp.ne.s32.totalorder %s265, %s267
      %p274 = scmp.eq.s32.totalorder %s26, 1
      %p275 = por %p273, %p274
      %p276 = scmp.ne.s32.totalorder %s267, %s268
      %p277 = scmp.eq.s32.totalorder %s26, 0
      %p278 = por %p276, %p277
      %p279 = scmp.ne.s32.totalorder %s267, %s268
      %p280 = scmp.eq.s32.totalorder %s27, 1
      %p281 = por %p279, %p280
      %p283 = scmp.ne.s32.totalorder %s268, %s282
      %p284 = scmp.eq.s32.totalorder %s27, 0
      %p285 = por %p283, %p284
      %s286 = ssub.s32 %s21, %s28
      %p287 = scmp.eq.s32.totalorder %s286, 0
      %s289 = sadd.s32 %s288, 1
      %s290 = scalar_select %p287, %s288, %s289
      %p293 = pneg %p287
      %p294 = scmp.eq.s32.totalorder %s21, 1
      %p295 = por %p293, %p294
      %p296 = scmp.ne.s32.totalorder %s288, %s291
      %p297 = scmp.eq.s32.totalorder %s21, 0
      %p298 = por %p296, %p297
      %p299 = scmp.ne.s32.totalorder %s288, %s291
      %p300 = scmp.eq.s32.totalorder %s26, 1
      %p301 = por %p299, %p300
      %p302 = scmp.ne.s32.totalorder %s291, %s292
      %p303 = scmp.eq.s32.totalorder %s26, 0
      %p304 = por %p302, %p303
      %p305 = scmp.ne.s32.totalorder %s291, %s292
      %p306 = scmp.eq.s32.totalorder %s27, 1
      %p307 = por %p305, %p306
      %p309 = scmp.ne.s32.totalorder %s292, %s308
      %p310 = scmp.eq.s32.totalorder %s27, 0
      %p311 = por %p309, %p310
      %p312 = scmp.le.s32.totalorder 1, %s21
      %p313 = scmp.lt.s32.totalorder %s21, 3
      %p314 = pnand %p312, %p313
      %p315 = pneg %p314
      // Predicated region
      $region9: #{tpu_custom_call.1} parent=5 // pred_check
        _
      $region10: #{tpu_custom_call.1} parent=5 // pred_check_branch
        %317 = sbr.rel (%p314) target = $region12
      $region11: #{tpu_custom_call.1} parent=5 // pred_region
        %s318 = ssub.s32 %s21, 1
        // Predicated region
        $region13: #{tpu_custom_call.1} parent=11 // pred_check
          %p319 = pneg %p68
        $region14: #{tpu_custom_call.1} parent=11 // pred_check_branch
          %321 = sbr.rel (%p319) target = $region16
        $region15: #{tpu_custom_call.1} parent=11 // pred_region
          _
        $region16: #{tpu_custom_call.1} parent=11 // pred_fallthru
          _
        // Predicated region
        $region17: #{tpu_custom_call.1} parent=11 // pred_check
          %p322 = pneg %p89
        $region18: #{tpu_custom_call.1} parent=11 // pred_check_branch
          %324 = sbr.rel (%p322) target = $region20
        $region19: #{tpu_custom_call.1} parent=11 // pred_region
          _
        $region20: #{tpu_custom_call.1} parent=11 // pred_fallthru
          _
        // Predicated region
        $region21: #{tpu_custom_call.1} parent=11 // pred_check
          %p325 = pneg %p110
        $region22: #{tpu_custom_call.1} parent=11 // pred_check_branch
          %327 = sbr.rel (%p325) target = $region24
        $region23: #{tpu_custom_call.1} parent=11 // pred_region
          _
        $region24: #{tpu_custom_call.1} parent=11 // pred_fallthru
          _
        // Predicated region
        $region25: #{tpu_custom_call.1} parent=11 // pred_check
          %p328 = pneg %p131
        $region26: #{tpu_custom_call.1} parent=11 // pred_check_branch
          %330 = sbr.rel (%p328) target = $region28
        $region27: #{tpu_custom_call.1} parent=11 // pred_region
          _
        $region28: #{tpu_custom_call.1} parent=11 // pred_fallthru
          _
        // Predicated region
        $region29: #{tpu_custom_call.1} parent=11 // pred_check
          %p331 = pneg %p152
        $region30: #{tpu_custom_call.1} parent=11 // pred_check_branch
          %333 = sbr.rel (%p331) target = $region32
        $region31: #{tpu_custom_call.1} parent=11 // pred_region
          _
        $region32: #{tpu_custom_call.1} parent=11 // pred_fallthru
          _
        // Predicated region
        $region33: #{tpu_custom_call.1} parent=11 // pred_check
          %p334 = pneg %p173
        $region34: #{tpu_custom_call.1} parent=11 // pred_check_branch
          %336 = sbr.rel (%p334) target = $region36
        $region35: #{tpu_custom_call.1} parent=11 // pred_region
          _
        $region36: #{tpu_custom_call.1} parent=11 // pred_fallthru
          _
        // Predicated region
        $region37: #{tpu_custom_call.1} parent=11 // pred_check
          %p337 = pneg %p194
        $region38: #{tpu_custom_call.1} parent=11 // pred_check_branch
          %339 = sbr.rel (%p337) target = $region40
        $region39: #{tpu_custom_call.1} parent=11 // pred_region
          _
        $region40: #{tpu_custom_call.1} parent=11 // pred_fallthru
          _
        // Predicated region
        $region41: #{tpu_custom_call.1} parent=11 // pred_check
          %p340 = pneg %p215
        $region42: #{tpu_custom_call.1} parent=11 // pred_check_branch
          %342 = sbr.rel (%p340) target = $region44
        $region43: #{tpu_custom_call.1} parent=11 // pred_region
          _
        $region44: #{tpu_custom_call.1} parent=11 // pred_fallthru
          _
        // Predicated region
        $region45: #{tpu_custom_call.1} parent=11 // pred_check
          %p343 = pneg %p236
        $region46: #{tpu_custom_call.1} parent=11 // pred_check_branch
          %345 = sbr.rel (%p343) target = $region48
        $region47: #{tpu_custom_call.1} parent=11 // pred_region
          _
        $region48: #{tpu_custom_call.1} parent=11 // pred_fallthru
          _
        // Predicated region
        $region49: #{tpu_custom_call.1} parent=11 // pred_check
          %p346 = pneg %p257
        $region50: #{tpu_custom_call.1} parent=11 // pred_check_branch
          %348 = sbr.rel (%p346) target = $region52
        $region51: #{tpu_custom_call.1} parent=11 // pred_region
          _
        $region52: #{tpu_custom_call.1} parent=11 // pred_fallthru
          _
        // Predicated region
        $region53: #{tpu_custom_call.1} parent=11 // pred_check
          %p349 = pneg %p278
        $region54: #{tpu_custom_call.1} parent=11 // pred_check_branch
          %351 = sbr.rel (%p349) target = $region56
        $region55: #{tpu_custom_call.1} parent=11 // pred_region
          _
        $region56: #{tpu_custom_call.1} parent=11 // pred_fallthru
          _
      $region12: #{tpu_custom_call.1} parent=5 // pred_fallthru
        _
      %p352 = scmp.lt.s32.totalorder %s21, 2
      // Predicated region
      $region57: #{tpu_custom_call.1} parent=5 // pred_check
        %p353 = pneg %p352
      $region58: #{tpu_custom_call.1} parent=5 // pred_check_branch
        %355 = sbr.rel (%p353) target = $region60
      $region59: #{tpu_custom_call.1} parent=5 // pred_region
        // Predicated region
        $region61: #{tpu_custom_call.1} parent=59 // pred_check
          %p356 = pneg %p41
        $region62: #{tpu_custom_call.1} parent=59 // pred_check_branch
          %358 = sbr.rel (%p356) target = $region64
        $region63: #{tpu_custom_call.1} parent=59 // pred_region
          %p359 = scmp.lt.s32.totalorder %s21, 1
          %s360 = scalar_select %p359, %s21, 1
          %s361 = smul.addr %s360, 8
          %s362 = scalar_lea.vmem %s0, %s361
        $region64: #{tpu_custom_call.1} parent=59 // pred_fallthru
          _
      $region60: #{tpu_custom_call.1} parent=5 // pred_fallthru
        _
      %p363 = scmp.le.s32.totalorder 1, %s21
      %p364 = scmp.lt.s32.totalorder %s21, 3
      %p365 = pnand %p363, %p364
      %p366 = pneg %p365
      // Predicated region
      $region65: #{tpu_custom_call.1} parent=5 // pred_check
        _
      $region66: #{tpu_custom_call.1} parent=5 // pred_check_branch
        %368 = sbr.rel (%p365) target = $region68
      $region67: #{tpu_custom_call.1} parent=5 // pred_region
        %s369 = ssub.s32 %s21, 1
        %p370 = scmp.lt.s32.totalorder %s26, 1
        %s371 = scalar_select %p370, %s26, 1
        %s372 = smul.addr %s371, 8
        %s373 = scalar_lea.vmem %s0, %s372
        %p374 = pneg %p47
        %p375 = pneg %p44
        %p376 = pneg %p68
        %p377 = pneg %p65
        %p378 = pneg %p89
        %p379 = pneg %p86
        %p380 = pneg %p110
        %p381 = pneg %p107
        %p382 = pneg %p131
        %p383 = pneg %p128
        %p384 = pneg %p152
        %p385 = pneg %p149
        %p386 = pneg %p173
        %p387 = pneg %p170
        %p388 = pneg %p194
        %p389 = pneg %p191
        %p390 = pneg %p215
        %p391 = pneg %p212
        %p392 = pneg %p236
        %p393 = pneg %p233
        %p394 = pneg %p257
        %p395 = pneg %p254
        %p396 = pneg %p278
        %p397 = pneg %p275
        %p398 = pneg %p304
        %p399 = pneg %p301
        %s400 = sand.u32 %s291, 1
        %s401 = scalar_lea.sflag [#allocation4], %s400
        %s402 = sand.u32 %s291, 1
        %s403 = smul.addr %s402, 8
        %s404 = scalar_lea.vmem [#allocation3], %s403
        %p405 = scmp.lt.s32.totalorder %s26, 1
        %s406 = scalar_select %p405, %s26, 1
        %s407 = smul.addr %s406, 8
        %s408 = scalar_lea.vmem %s0, %s407
        %v409 = vld [vmem:[%s408] sm:$0xff]
        %v410 = vmul.f32 %v409, %v409
        %vm411 = vcmask 261120
        %v412 = vsel %vm411, %v410, 0.0
        %413 = vadd.xlane.f32.xlu0 %v412
        %v414 = vpop.xlane.xlu0 %413
        %v415 = vrcp.pop 32.0
        %v416 = vmul.f32 %v414, %v415
        %v417 = vadd.f32 %v416, 1e-05
        %v418 = vrsqrt.pop %v417
        %v419 = vmul.f32 %v409, %v418
        %v420 = vld [vmem:[%s1] sm:$0x1]
        %v422 = vlaneseq
        %v423 = vshrl.u32 %v422, 7
        %v424 = vsub.s32 0, %v423
        %v425 = vrot.slane %v420, %v424
        %v427 = vmul.f32 %v419, %v425
        %v428 = vld [vmem:[%s2] sm:$0xff]
        %v429 = vld [vmem:[%s2 + $0x8] sm:$0xff]
        %v430 = vld [vmem:[%s2 + $0x10] sm:$0xff]
        %v431 = vld [vmem:[%s2 + $0x18] sm:$0xff]
        %v433 = vsel %vm411, %v427, 0
        %435 = vmatprep.subr.mxu0 0.0
        %436 = vmatpush1.msra.mxu0 %v428
        %437 = vmatprep.subr.mxu0 0.0
        %438 = vmatpush1.msra.mxu0 %v429
        %439 = vmatprep.subr.mxu0 0.0
        %440 = vmatpush1.msra.mxu0 %v430
        %441 = vmatprep.subr.mxu0 0.0
        %442 = vmatpush1.msra.mxu0 %v431
        %443 = vmatprep.subr.mxu0 0.0
        %444 = vmatpush1.msra.mxu0 0.0
        %445 = vmatprep.subr.mxu0 0.0
        %446 = vmatpush1.msra.mxu0 0.0
        %447 = vmatprep.subr.mxu0 0.0
        %448 = vmatpush1.msra.mxu0 0.0
        %449 = vmatprep.subr.mxu0 0.0
        %450 = vmatpush1.msra.mxu0 0.0
        %451 = vmatprep.subr.mxu0 0.0
        %452 = vmatpush1.msra.mxu0 0.0
        %453 = vmatprep.subr.mxu0 0.0
        %454 = vmatpush1.msra.mxu0 0.0
        %455 = vmatprep.subr.mxu0 0.0
        %456 = vmatpush1.msra.mxu0 0.0
        %457 = vmatprep.subr.mxu0 0.0
        %458 = vmatpush1.msra.mxu0 0.0
        %459 = vmatprep.subr.mxu0 0.0
        %460 = vmatpush1.msra.mxu0 0.0
        %461 = vmatprep.subr.mxu0 0.0
        %462 = vmatpush1.msra.mxu0 0.0
        %463 = vmatprep.subr.mxu0 0.0
        %464 = vmatpush1.msra.mxu0 0.0
        %465 = vmatprep.subr.mxu0 0.0
        %466 = vmatpush1.msra.mxu0 0.0
        %467 = vmatprep.subr.mxu0 0.0
        %468 = vmatpush1.msra.mxu0 0.0
        %469 = vmatprep.subr.mxu0 0.0
        %470 = vmatpush1.msra.mxu0 0.0
        %471 = vmatprep.subr.mxu0 0.0
        %472 = vmatpush1.msra.mxu0 0.0
        %473 = vmatprep.subr.mxu0 0.0
        %474 = vmatpush1.msra.mxu0 0.0
        %475 = vmatprep.subr.mxu0 0.0
        %476 = vmatpush1.msra.mxu0 0.0
        %477 = vmatprep.subr.mxu0 0.0
        %478 = vmatpush1.msra.mxu0 0.0
        %479 = vmatprep.subr.mxu0 0.0
        %480 = vmatpush1.msra.mxu0 0.0
        %481 = vmatprep.subr.mxu0 0.0
        %482 = vmatpush1.msra.mxu0 0.0
        %483 = vmatprep.subr.mxu0 0.0
        %484 = vmatpush1.msra.mxu0 0.0
        %485 = vmatprep.subr.mxu0 0.0
        %486 = vmatpush1.msra.mxu0 0.0
        %487 = vmatprep.subr.mxu0 0.0
        %488 = vmatpush1.msra.mxu0 0.0
        %489 = vmatprep.subr.mxu0 0.0
        %490 = vmatpush1.msra.mxu0 0.0
        %491 = vmatprep.subr.mxu0 0.0
        %492 = vmatpush1.msra.mxu0 0.0
        %493 = vmatprep.subr.mxu0 0.0
        %494 = vmatpush1.msra.mxu0 0.0
        %495 = vmatprep.subr.mxu0 0.0
        %496 = vmatpush1.msra.mxu0 0.0
        %497 = vmatprep.subr.mxu0 0.0
        %498 = vmatpush1.msra.mxu0 0.0
        %499 = vmatprep.mubr.f32.mxu0 0.0
        %500 = vmatmul.mubr.f32.gmra.mrb[0].mxu0 %v433
        %v501 = vpop.f32.mrb[0].mxu0
        %v502 = vadd.f32 0.0, %v501
        %v503 = vpop.f32.mrb[0].mxu0
        %504 = vdwg.mxu0
        %v505 = vld [vmem:[%s3] sm:$0xff]
        %v506 = vld [vmem:[%s3 + $0x8] sm:$0xff]
        %v507 = vld [vmem:[%s3 + $0x10] sm:$0xff]
        %v508 = vld [vmem:[%s3 + $0x18] sm:$0xff]
        %509 = vmatprep.subr.mxu0 0.0
        %510 = vmatpush1.msra.mxu0 %v505
        %511 = vmatprep.subr.mxu0 0.0
        %512 = vmatpush1.msra.mxu0 %v506
        %513 = vmatprep.subr.mxu0 0.0
        %514 = vmatpush1.msra.mxu0 %v507
        %515 = vmatprep.subr.mxu0 0.0
        %516 = vmatpush1.msra.mxu0 %v508
        %517 = vmatprep.subr.mxu0 0.0
        %518 = vmatpush1.msra.mxu0 0.0
        %519 = vmatprep.subr.mxu0 0.0
        %520 = vmatpush1.msra.mxu0 0.0
        %521 = vmatprep.subr.mxu0 0.0
        %522 = vmatpush1.msra.mxu0 0.0
        %523 = vmatprep.subr.mxu0 0.0
        %524 = vmatpush1.msra.mxu0 0.0
        %525 = vmatprep.subr.mxu0 0.0
        %526 = vmatpush1.msra.mxu0 0.0
        %527 = vmatprep.subr.mxu0 0.0
        %528 = vmatpush1.msra.mxu0 0.0
        %529 = vmatprep.subr.mxu0 0.0
        %530 = vmatpush1.msra.mxu0 0.0
        %531 = vmatprep.subr.mxu0 0.0
        %532 = vmatpush1.msra.mxu0 0.0
        %533 = vmatprep.subr.mxu0 0.0
        %534 = vmatpush1.msra.mxu0 0.0
        %535 = vmatprep.subr.mxu0 0.0
        %536 = vmatpush1.msra.mxu0 0.0
        %537 = vmatprep.subr.mxu0 0.0
        %538 = vmatpush1.msra.mxu0 0.0
        %539 = vmatprep.subr.mxu0 0.0
        %540 = vmatpush1.msra.mxu0 0.0
        %541 = vmatprep.subr.mxu0 0.0
        %542 = vmatpush1.msra.mxu0 0.0
        %543 = vmatprep.subr.mxu0 0.0
        %544 = vmatpush1.msra.mxu0 0.0
        %545 = vmatprep.subr.mxu0 0.0
        %546 = vmatpush1.msra.mxu0 0.0
        %547 = vmatprep.subr.mxu0 0.0
        %548 = vmatpush1.msra.mxu0 0.0
        %549 = vmatprep.subr.mxu0 0.0
        %550 = vmatpush1.msra.mxu0 0.0
        %551 = vmatprep.subr.mxu0 0.0
        %552 = vmatpush1.msra.mxu0 0.0
        %553 = vmatprep.subr.mxu0 0.0
        %554 = vmatpush1.msra.mxu0 0.0
        %555 = vmatprep.subr.mxu0 0.0
        %556 = vmatpush1.msra.mxu0 0.0
        %557 = vmatprep.subr.mxu0 0.0
        %558 = vmatpush1.msra.mxu0 0.0
        %559 = vmatprep.subr.mxu0 0.0
        %560 = vmatpush1.msra.mxu0 0.0
        %561 = vmatprep.subr.mxu0 0.0
        %562 = vmatpush1.msra.mxu0 0.0
        %563 = vmatprep.subr.mxu0 0.0
        %564 = vmatpush1.msra.mxu0 0.0
        %565 = vmatprep.subr.mxu0 0.0
        %566 = vmatpush1.msra.mxu0 0.0
        %567 = vmatprep.subr.mxu0 0.0
        %568 = vmatpush1.msra.mxu0 0.0
        %569 = vmatprep.subr.mxu0 0.0
        %570 = vmatpush1.msra.mxu0 0.0
        %571 = vmatprep.subr.mxu0 0.0
        %572 = vmatpush1.msra.mxu0 0.0
        %573 = vmatprep.mubr.f32.mxu0 0.0
        %574 = vmatmul.mubr.f32.gmra.mrb[0].mxu0 %v433
        %v575 = vpop.f32.mrb[0].mxu0
        %v576 = vadd.f32 0.0, %v575
        %v577 = vpop.f32.mrb[0].mxu0
        %578 = vdwg.mxu0
        %v579 = vld [vmem:[%s4] sm:$0xff]
        %v580 = vld [vmem:[%s4 + $0x8] sm:$0xff]
        %v581 = vld [vmem:[%s4 + $0x10] sm:$0xff]
        %v582 = vld [vmem:[%s4 + $0x18] sm:$0xff]
        %583 = vmatprep.subr.mxu0 0.0
        %584 = vmatpush1.msra.mxu0 %v579
        %585 = vmatprep.subr.mxu0 0.0
        %586 = vmatpush1.msra.mxu0 %v580
        %587 = vmatprep.subr.mxu0 0.0
        %588 = vmatpush1.msra.mxu0 %v581
        %589 = vmatprep.subr.mxu0 0.0
        %590 = vmatpush1.msra.mxu0 %v582
        %591 = vmatprep.subr.mxu0 0.0
        %592 = vmatpush1.msra.mxu0 0.0
        %593 = vmatprep.subr.mxu0 0.0
        %594 = vmatpush1.msra.mxu0 0.0
        %595 = vmatprep.subr.mxu0 0.0
        %596 = vmatpush1.msra.mxu0 0.0
        %597 = vmatprep.subr.mxu0 0.0
        %598 = vmatpush1.msra.mxu0 0.0
        %599 = vmatprep.subr.mxu0 0.0
        %600 = vmatpush1.msra.mxu0 0.0
        %601 = vmatprep.subr.mxu0 0.0
        %602 = vmatpush1.msra.mxu0 0.0
        %603 = vmatprep.subr.mxu0 0.0
        %604 = vmatpush1.msra.mxu0 0.0
        %605 = vmatprep.subr.mxu0 0.0
        %606 = vmatpush1.msra.mxu0 0.0
        %607 = vmatprep.subr.mxu0 0.0
        %608 = vmatpush1.msra.mxu0 0.0
        %609 = vmatprep.subr.mxu0 0.0
        %610 = vmatpush1.msra.mxu0 0.0
        %611 = vmatprep.subr.mxu0 0.0
        %612 = vmatpush1.msra.mxu0 0.0
        %613 = vmatprep.subr.mxu0 0.0
        %614 = vmatpush1.msra.mxu0 0.0
        %615 = vmatprep.subr.mxu0 0.0
        %616 = vmatpush1.msra.mxu0 0.0
        %617 = vmatprep.subr.mxu0 0.0
        %618 = vmatpush1.msra.mxu0 0.0
        %619 = vmatprep.subr.mxu0 0.0
        %620 = vmatpush1.msra.mxu0 0.0
        %621 = vmatprep.subr.mxu0 0.0
        %622 = vmatpush1.msra.mxu0 0.0
        %623 = vmatprep.subr.mxu0 0.0
        %624 = vmatpush1.msra.mxu0 0.0
        %625 = vmatprep.subr.mxu0 0.0
        %626 = vmatpush1.msra.mxu0 0.0
        %627 = vmatprep.subr.mxu0 0.0
        %628 = vmatpush1.msra.mxu0 0.0
        %629 = vmatprep.subr.mxu0 0.0
        %630 = vmatpush1.msra.mxu0 0.0
        %631 = vmatprep.subr.mxu0 0.0
        %632 = vmatpush1.msra.mxu0 0.0
        %633 = vmatprep.subr.mxu0 0.0
        %634 = vmatpush1.msra.mxu0 0.0
        %635 = vmatprep.subr.mxu0 0.0
        %636 = vmatpush1.msra.mxu0 0.0
        %637 = vmatprep.subr.mxu0 0.0
        %638 = vmatpush1.msra.mxu0 0.0
        %639 = vmatprep.subr.mxu0 0.0
        %640 = vmatpush1.msra.mxu0 0.0
        %641 = vmatprep.subr.mxu0 0.0
        %642 = vmatpush1.msra.mxu0 0.0
        %643 = vmatprep.subr.mxu0 0.0
        %644 = vmatpush1.msra.mxu0 0.0
        %645 = vmatprep.subr.mxu0 0.0
        %646 = vmatpush1.msra.mxu0 0.0
        %647 = vmatprep.mubr.f32.mxu0 0.0
        %648 = vmatmul.mubr.f32.gmra.mrb[0].mxu0 %v433
        %v649 = vpop.f32.mrb[0].mxu0
        %v650 = vadd.f32 0.0, %v649
        %v651 = vpop.f32.mrb[0].mxu0
        %652 = vdwg.mxu0
        %654 = vrot.lane.b32.xlu0 %v502, 120
        %v655 = vpop.permute.xlu0 %654
        %657 = vrot.lane.b32.xlu0 %v502, 112
        %v658 = vpop.permute.xlu0 %657
        %660 = vrot.lane.b32.xlu0 %v502, 104
        %v661 = vpop.permute.xlu0 %660
        %664 = vrot.lane.b32.xlu0 %v576, 120
        %v665 = vpop.permute.xlu0 %664
        %668 = vrot.lane.b32.xlu0 %v650, 120
        %v669 = vpop.permute.xlu0 %668
        %v671 = vld [vmem:[%s10] sm:$0xff]
        %v672 = vld [vmem:[%s11] sm:$0xff]
        %v673 = vsub.f32 0.0, %v502
        %v674 = vsub.f32 0.0, %v655
        %v675 = vsub.f32 0.0, %v658
        %v676 = vsub.f32 0.0, %v661
        %681 = vrot.lane.b32.xlu0 %v673, 124
        %v682 = vpop.permute.xlu0 %681
        %683 = vrot.lane.b32.xlu0 %v674, 124
        %v684 = vpop.permute.xlu0 %683
        %685 = vrot.lane.b32.xlu0 %v675, 124
        %v686 = vpop.permute.xlu0 %685
        %687 = vrot.lane.b32.xlu0 %v676, 124
        %v688 = vpop.permute.xlu0 %687
        %693 = vrot.lane.b32.xlu0 %v502, 4
        %v694 = vpop.permute.xlu0 %693
        %695 = vrot.lane.b32.xlu0 %v655, 4
        %v696 = vpop.permute.xlu0 %695
        %697 = vrot.lane.b32.xlu0 %v658, 4
        %v698 = vpop.permute.xlu0 %697
        %699 = vrot.lane.b32.xlu0 %v661, 4
        %v700 = vpop.permute.xlu0 %699
        %vm705 = vcmask 31744
        %v706 = vsel %vm705, %v682, %v694
        %v707 = vsel %vm705, %v684, %v696
        %v708 = vsel %vm705, %v686, %v698
        %v709 = vsel %vm705, %v688, %v700
        %v710 = vmul.f32 %v502, %v671
        %v711 = vmul.f32 %v655, %v671
        %v712 = vmul.f32 %v658, %v671
        %v713 = vmul.f32 %v661, %v671
        %v714 = vmul.f32 %v706, %v672
        %v715 = vmul.f32 %v707, %v672
        %v716 = vmul.f32 %v708, %v672
        %v717 = vmul.f32 %v709, %v672
        %v718 = vadd.f32 %v710, %v714
        %v719 = vadd.f32 %v711, %v715
        %v720 = vadd.f32 %v712, %v716
        %v721 = vadd.f32 %v713, %v717
        %v722 = vsub.f32 0.0, %v576
        %v723 = vsub.f32 0.0, %v665
        %726 = vrot.lane.b32.xlu0 %v722, 124
        %v727 = vpop.permute.xlu0 %726
        %728 = vrot.lane.b32.xlu0 %v723, 124
        %v729 = vpop.permute.xlu0 %728
        %732 = vrot.lane.b32.xlu0 %v576, 4
        %v733 = vpop.permute.xlu0 %732
        %734 = vrot.lane.b32.xlu0 %v665, 4
        %v735 = vpop.permute.xlu0 %734
        %v738 = vsel %vm705, %v727, %v733
        %v739 = vsel %vm705, %v729, %v735
        %v740 = vmul.f32 %v576, %v671
        %v741 = vmul.f32 %v665, %v671
        %v742 = vmul.f32 %v738, %v672
        %v743 = vmul.f32 %v739, %v672
        %v744 = vadd.f32 %v740, %v742
        %v745 = vadd.f32 %v741, %v743
        %vm746 = vcmask 64512
        %v748 = vsel %vm746, %v718, 0
        %v751 = vsel %vm746, %v744, 0
        %753 = vmatprep.subr.mxu0 0.0
        %754 = vmatpush1.xpose.msra.mxu0 %v751
        %755 = vmatprep.subr.mxu0 0.0
        %756 = vmatpush1.xpose.msra.mxu0 0.0
        %757 = vmatprep.subr.mxu0 0.0
        %758 = vmatpush1.xpose.msra.mxu0 0.0
        %759 = vmatprep.subr.mxu0 0.0
        %760 = vmatpush1.xpose.msra.mxu0 0.0
        %761 = vmatprep.subr.mxu0 0.0
        %762 = vmatpush1.xpose.msra.mxu0 0.0
        %763 = vmatprep.subr.mxu0 0.0
        %764 = vmatpush1.xpose.msra.mxu0 0.0
        %765 = vmatprep.subr.mxu0 0.0
        %766 = vmatpush1.xpose.msra.mxu0 0.0
        %767 = vmatprep.subr.mxu0 0.0
        %768 = vmatpush1.xpose.msra.mxu0 0.0
        %769 = vmatprep.subr.mxu0 0.0
        %770 = vmatpush1.xpose.msra.mxu0 0.0
        %771 = vmatprep.subr.mxu0 0.0
        %772 = vmatpush1.xpose.msra.mxu0 0.0
        %773 = vmatprep.subr.mxu0 0.0
        %774 = vmatpush1.xpose.msra.mxu0 0.0
        %775 = vmatprep.subr.mxu0 0.0
        %776 = vmatpush1.xpose.msra.mxu0 0.0
        %777 = vmatprep.subr.mxu0 0.0
        %778 = vmatpush1.xpose.msra.mxu0 0.0
        %779 = vmatprep.subr.mxu0 0.0
        %780 = vmatpush1.xpose.msra.mxu0 0.0
        %781 = vmatprep.subr.mxu0 0.0
        %782 = vmatpush1.xpose.msra.mxu0 0.0
        %783 = vmatprep.subr.mxu0 0.0
        %784 = vmatpush1.xpose.msra.mxu0 0.0
        %785 = vmatprep.subr.mxu0 0.0
        %786 = vmatpush1.xpose.msra.mxu0 0.0
        %787 = vmatprep.subr.mxu0 0.0
        %788 = vmatpush1.xpose.msra.mxu0 0.0
        %789 = vmatprep.subr.mxu0 0.0
        %790 = vmatpush1.xpose.msra.mxu0 0.0
        %791 = vmatprep.subr.mxu0 0.0
        %792 = vmatpush1.xpose.msra.mxu0 0.0
        %793 = vmatprep.subr.mxu0 0.0
        %794 = vmatpush1.xpose.msra.mxu0 0.0
        %795 = vmatprep.subr.mxu0 0.0
        %796 = vmatpush1.xpose.msra.mxu0 0.0
        %797 = vmatprep.subr.mxu0 0.0
        %798 = vmatpush1.xpose.msra.mxu0 0.0
        %799 = vmatprep.subr.mxu0 0.0
        %800 = vmatpush1.xpose.msra.mxu0 0.0
        %801 = vmatprep.subr.mxu0 0.0
        %802 = vmatpush1.xpose.msra.mxu0 0.0
        %803 = vmatprep.subr.mxu0 0.0
        %804 = vmatpush1.xpose.msra.mxu0 0.0
        %805 = vmatprep.subr.mxu0 0.0
        %806 = vmatpush1.xpose.msra.mxu0 0.0
        %807 = vmatprep.subr.mxu0 0.0
        %808 = vmatpush1.xpose.msra.mxu0 0.0
        %809 = vmatprep.subr.mxu0 0.0
        %810 = vmatpush1.xpose.msra.mxu0 0.0
        %811 = vmatprep.subr.mxu0 0.0
        %812 = vmatpush1.xpose.msra.mxu0 0.0
        %813 = vmatprep.subr.mxu0 0.0
        %814 = vmatpush1.xpose.msra.mxu0 0.0
        %815 = vmatprep.subr.mxu0 0.0
        %816 = vmatpush1.xpose.msra.mxu0 0.0
        %817 = vmatprep.mubr.f32.mxu0 0.0
        %818 = vmatmul.mubr.f32.gmra.mrb[0].mxu0 %v748
        %v819 = vpop.f32.mrb[0].mxu0
        %v820 = vadd.f32 0.0, %v819
        %v821 = vpop.f32.mrb[0].mxu0
        %822 = vdwg.mxu0
        %v824 = vsel %vm746, %v719, 0
        %826 = vmatprep.subr.mxu0 0.0
        %827 = vmatpush1.xpose.msra.mxu0 %v751
        %828 = vmatprep.subr.mxu0 0.0
        %829 = vmatpush1.xpose.msra.mxu0 0.0
        %830 = vmatprep.subr.mxu0 0.0
        %831 = vmatpush1.xpose.msra.mxu0 0.0
        %832 = vmatprep.subr.mxu0 0.0
        %833 = vmatpush1.xpose.msra.mxu0 0.0
        %834 = vmatprep.subr.mxu0 0.0
        %835 = vmatpush1.xpose.msra.mxu0 0.0
        %836 = vmatprep.subr.mxu0 0.0
        %837 = vmatpush1.xpose.msra.mxu0 0.0
        %838 = vmatprep.subr.mxu0 0.0
        %839 = vmatpush1.xpose.msra.mxu0 0.0
        %840 = vmatprep.subr.mxu0 0.0
        %841 = vmatpush1.xpose.msra.mxu0 0.0
        %842 = vmatprep.subr.mxu0 0.0
        %843 = vmatpush1.xpose.msra.mxu0 0.0
        %844 = vmatprep.subr.mxu0 0.0
        %845 = vmatpush1.xpose.msra.mxu0 0.0
        %846 = vmatprep.subr.mxu0 0.0
        %847 = vmatpush1.xpose.msra.mxu0 0.0
        %848 = vmatprep.subr.mxu0 0.0
        %849 = vmatpush1.xpose.msra.mxu0 0.0
        %850 = vmatprep.subr.mxu0 0.0
        %851 = vmatpush1.xpose.msra.mxu0 0.0
        %852 = vmatprep.subr.mxu0 0.0
        %853 = vmatpush1.xpose.msra.mxu0 0.0
        %854 = vmatprep.subr.mxu0 0.0
        %855 = vmatpush1.xpose.msra.mxu0 0.0
        %856 = vmatprep.subr.mxu0 0.0
        %857 = vmatpush1.xpose.msra.mxu0 0.0
        %858 = vmatprep.subr.mxu0 0.0
        %859 = vmatpush1.xpose.msra.mxu0 0.0
        %860 = vmatprep.subr.mxu0 0.0
        %861 = vmatpush1.xpose.msra.mxu0 0.0
        %862 = vmatprep.subr.mxu0 0.0
        %863 = vmatpush1.xpose.msra.mxu0 0.0
        %864 = vmatprep.subr.mxu0 0.0
        %865 = vmatpush1.xpose.msra.mxu0 0.0
        %866 = vmatprep.subr.mxu0 0.0
        %867 = vmatpush1.xpose.msra.mxu0 0.0
        %868 = vmatprep.subr.mxu0 0.0
        %869 = vmatpush1.xpose.msra.mxu0 0.0
        %870 = vmatprep.subr.mxu0 0.0
        %871 = vmatpush1.xpose.msra.mxu0 0.0
        %872 = vmatprep.subr.mxu0 0.0
        %873 = vmatpush1.xpose.msra.mxu0 0.0
        %874 = vmatprep.subr.mxu0 0.0
        %875 = vmatpush1.xpose.msra.mxu0 0.0
        %876 = vmatprep.subr.mxu0 0.0
        %877 = vmatpush1.xpose.msra.mxu0 0.0
        %878 = vmatprep.subr.mxu0 0.0
        %879 = vmatpush1.xpose.msra.mxu0 0.0
        %880 = vmatprep.subr.mxu0 0.0
        %881 = vmatpush1.xpose.msra.mxu0 0.0
        %882 = vmatprep.subr.mxu0 0.0
        %883 = vmatpush1.xpose.msra.mxu0 0.0
        %884 = vmatprep.subr.mxu0 0.0
        %885 = vmatpush1.xpose.msra.mxu0 0.0
        %886 = vmatprep.subr.mxu0 0.0
        %887 = vmatpush1.xpose.msra.mxu0 0.0
        %888 = vmatprep.subr.mxu0 0.0
        %889 = vmatpush1.xpose.msra.mxu0 0.0
        %890 = vmatprep.mubr.f32.mxu0 0.0
        %891 = vmatmul.mubr.f32.gmra.mrb[0].mxu0 %v824
        %v892 = vpop.f32.mrb[0].mxu0
        %v893 = vadd.f32 0.0, %v892
        %v894 = vpop.f32.mrb[0].mxu0
        %895 = vdwg.mxu0
        %v897 = vsel %vm746, %v720, 0
        %v900 = vsel %vm746, %v745, 0
        %902 = vmatprep.subr.mxu0 0.0
        %903 = vmatpush1.xpose.msra.mxu0 %v900
        %904 = vmatprep.subr.mxu0 0.0
        %905 = vmatpush1.xpose.msra.mxu0 0.0
        %906 = vmatprep.subr.mxu0 0.0
        %907 = vmatpush1.xpose.msra.mxu0 0.0
        %908 = vmatprep.subr.mxu0 0.0
        %909 = vmatpush1.xpose.msra.mxu0 0.0
        %910 = vmatprep.subr.mxu0 0.0
        %911 = vmatpush1.xpose.msra.mxu0 0.0
        %912 = vmatprep.subr.mxu0 0.0
        %913 = vmatpush1.xpose.msra.mxu0 0.0
        %914 = vmatprep.subr.mxu0 0.0
        %915 = vmatpush1.xpose.msra.mxu0 0.0
        %916 = vmatprep.subr.mxu0 0.0
        %917 = vmatpush1.xpose.msra.mxu0 0.0
        %918 = vmatprep.subr.mxu0 0.0
        %919 = vmatpush1.xpose.msra.mxu0 0.0
        %920 = vmatprep.subr.mxu0 0.0
        %921 = vmatpush1.xpose.msra.mxu0 0.0
        %922 = vmatprep.subr.mxu0 0.0
        %923 = vmatpush1.xpose.msra.mxu0 0.0
        %924 = vmatprep.subr.mxu0 0.0
        %925 = vmatpush1.xpose.msra.mxu0 0.0
        %926 = vmatprep.subr.mxu0 0.0
        %927 = vmatpush1.xpose.msra.mxu0 0.0
        %928 = vmatprep.subr.mxu0 0.0
        %929 = vmatpush1.xpose.msra.mxu0 0.0
        %930 = vmatprep.subr.mxu0 0.0
        %931 = vmatpush1.xpose.msra.mxu0 0.0
        %932 = vmatprep.subr.mxu0 0.0
        %933 = vmatpush1.xpose.msra.mxu0 0.0
        %934 = vmatprep.subr.mxu0 0.0
        %935 = vmatpush1.xpose.msra.mxu0 0.0
        %936 = vmatprep.subr.mxu0 0.0
        %937 = vmatpush1.xpose.msra.mxu0 0.0
        %938 = vmatprep.subr.mxu0 0.0
        %939 = vmatpush1.xpose.msra.mxu0 0.0
        %940 = vmatprep.subr.mxu0 0.0
        %941 = vmatpush1.xpose.msra.mxu0 0.0
        %942 = vmatprep.subr.mxu0 0.0
        %943 = vmatpush1.xpose.msra.mxu0 0.0
        %944 = vmatprep.subr.mxu0 0.0
        %945 = vmatpush1.xpose.msra.mxu0 0.0
        %946 = vmatprep.subr.mxu0 0.0
        %947 = vmatpush1.xpose.msra.mxu0 0.0
        %948 = vmatprep.subr.mxu0 0.0
        %949 = vmatpush1.xpose.msra.mxu0 0.0
        %950 = vmatprep.subr.mxu0 0.0
        %951 = vmatpush1.xpose.msra.mxu0 0.0
        %952 = vmatprep.subr.mxu0 0.0
        %953 = vmatpush1.xpose.msra.mxu0 0.0
        %954 = vmatprep.subr.mxu0 0.0
        %955 = vmatpush1.xpose.msra.mxu0 0.0
        %956 = vmatprep.subr.mxu0 0.0
        %957 = vmatpush1.xpose.msra.mxu0 0.0
        %958 = vmatprep.subr.mxu0 0.0
        %959 = vmatpush1.xpose.msra.mxu0 0.0
        %960 = vmatprep.subr.mxu0 0.0
        %961 = vmatpush1.xpose.msra.mxu0 0.0
        %962 = vmatprep.subr.mxu0 0.0
        %963 = vmatpush1.xpose.msra.mxu0 0.0
        %964 = vmatprep.subr.mxu0 0.0
        %965 = vmatpush1.xpose.msra.mxu0 0.0
        %966 = vmatprep.mubr.f32.mxu0 0.0
        %967 = vmatmul.mubr.f32.gmra.mrb[0].mxu0 %v897
        %v968 = vpop.f32.mrb[0].mxu0
        %v969 = vadd.f32 0.0, %v968
        %v970 = vpop.f32.mrb[0].mxu0
        %971 = vdwg.mxu0
        %v973 = vsel %vm746, %v721, 0
        %975 = vmatprep.subr.mxu0 0.0
        %976 = vmatpush1.xpose.msra.mxu0 %v900
        %977 = vmatprep.subr.mxu0 0.0
        %978 = vmatpush1.xpose.msra.mxu0 0.0
        %979 = vmatprep.subr.mxu0 0.0
        %980 = vmatpush1.xpose.msra.mxu0 0.0
        %981 = vmatprep.subr.mxu0 0.0
        %982 = vmatpush1.xpose.msra.mxu0 0.0
        %983 = vmatprep.subr.mxu0 0.0
        %984 = vmatpush1.xpose.msra.mxu0 0.0
        %985 = vmatprep.subr.mxu0 0.0
        %986 = vmatpush1.xpose.msra.mxu0 0.0
        %987 = vmatprep.subr.mxu0 0.0
        %988 = vmatpush1.xpose.msra.mxu0 0.0
        %989 = vmatprep.subr.mxu0 0.0
        %990 = vmatpush1.xpose.msra.mxu0 0.0
        %991 = vmatprep.subr.mxu0 0.0
        %992 = vmatpush1.xpose.msra.mxu0 0.0
        %993 = vmatprep.subr.mxu0 0.0
        %994 = vmatpush1.xpose.msra.mxu0 0.0
        %995 = vmatprep.subr.mxu0 0.0
        %996 = vmatpush1.xpose.msra.mxu0 0.0
        %997 = vmatprep.subr.mxu0 0.0
        %998 = vmatpush1.xpose.msra.mxu0 0.0
        %999 = vmatprep.subr.mxu0 0.0
        %1000 = vmatpush1.xpose.msra.mxu0 0.0
        %1001 = vmatprep.subr.mxu0 0.0
        %1002 = vmatpush1.xpose.msra.mxu0 0.0
        %1003 = vmatprep.subr.mxu0 0.0
        %1004 = vmatpush1.xpose.msra.mxu0 0.0
        %1005 = vmatprep.subr.mxu0 0.0
        %1006 = vmatpush1.xpose.msra.mxu0 0.0
        %1007 = vmatprep.subr.mxu0 0.0
        %1008 = vmatpush1.xpose.msra.mxu0 0.0
        %1009 = vmatprep.subr.mxu0 0.0
        %1010 = vmatpush1.xpose.msra.mxu0 0.0
        %1011 = vmatprep.subr.mxu0 0.0
        %1012 = vmatpush1.xpose.msra.mxu0 0.0
        %1013 = vmatprep.subr.mxu0 0.0
        %1014 = vmatpush1.xpose.msra.mxu0 0.0
        %1015 = vmatprep.subr.mxu0 0.0
        %1016 = vmatpush1.xpose.msra.mxu0 0.0
        %1017 = vmatprep.subr.mxu0 0.0
        %1018 = vmatpush1.xpose.msra.mxu0 0.0
        %1019 = vmatprep.subr.mxu0 0.0
        %1020 = vmatpush1.xpose.msra.mxu0 0.0
        %1021 = vmatprep.subr.mxu0 0.0
        %1022 = vmatpush1.xpose.msra.mxu0 0.0
        %1023 = vmatprep.subr.mxu0 0.0
        %1024 = vmatpush1.xpose.msra.mxu0 0.0
        %1025 = vmatprep.subr.mxu0 0.0
        %1026 = vmatpush1.xpose.msra.mxu0 0.0
        %1027 = vmatprep.subr.mxu0 0.0
        %1028 = vmatpush1.xpose.msra.mxu0 0.0
        %1029 = vmatprep.subr.mxu0 0.0
        %1030 = vmatpush1.xpose.msra.mxu0 0.0
        %1031 = vmatprep.subr.mxu0 0.0
        %1032 = vmatpush1.xpose.msra.mxu0 0.0
        %1033 = vmatprep.subr.mxu0 0.0
        %1034 = vmatpush1.xpose.msra.mxu0 0.0
        %1035 = vmatprep.subr.mxu0 0.0
        %1036 = vmatpush1.xpose.msra.mxu0 0.0
        %1037 = vmatprep.subr.mxu0 0.0
        %1038 = vmatpush1.xpose.msra.mxu0 0.0
        %1039 = vmatprep.mubr.f32.mxu0 0.0
        %1040 = vmatmul.mubr.f32.gmra.mrb[0].mxu0 %v973
        %v1041 = vpop.f32.mrb[0].mxu0
        %v1042 = vadd.f32 0.0, %v1041
        %v1043 = vpop.f32.mrb[0].mxu0
        %1044 = vdwg.mxu0
        %v1045 = vmul.f32 %v820, 0.35355338
        %v1046 = vmul.f32 %v893, 0.35355338
        %v1047 = vmul.f32 %v969, 0.35355338
        %v1048 = vmul.f32 %v1042, 0.35355338
        %v1049 = vlaneseq
        %v1050 = vshrl.u32 %v1049, 7
        %v1051 = vlaneseq
        %v1052 = vand.u32 %v1051, 127
        %vm1053 = vcmp.le.s32.totalorder %v1052, %v1050
        %v1054 = vsel %vm1053, 1, 0
        %vm1055 = vcmp.eq.s32.totalorder %v1054, 1
        %v1056 = vsel %vm1055, %v1045, -inf
        %v1057 = vsel %vm1055, %v1046, -inf
        %v1058 = vsel %vm1055, %v1047, -inf
        %v1059 = vsel %vm1055, %v1048, -inf
        %v1060 = vsel %vm746, %v1056, -inf
        %1061 = vmax.xlane.f32.xlu0 %v1060
        %v1062 = vpop.xlane.xlu0 %1061
        %v1063 = vsel %vm746, %v1057, -inf
        %1064 = vmax.xlane.f32.xlu0 %v1063
        %v1065 = vpop.xlane.xlu0 %1064
        %v1066 = vsel %vm746, %v1058, -inf
        %1067 = vmax.xlane.f32.xlu0 %v1066
        %v1068 = vpop.xlane.xlu0 %1067
        %v1069 = vsel %vm746, %v1059, -inf
        %1070 = vmax.xlane.f32.xlu0 %v1069
        %v1071 = vpop.xlane.xlu0 %1070
        %v1072 = vsub.f32 %v1056, %v1062
        %v1073 = vsub.f32 %v1057, %v1065
        %v1074 = vsub.f32 %v1058, %v1068
        %v1075 = vsub.f32 %v1059, %v1071
        %v1076 = vmul.f32 %v1072, 1.442695
        %v1077 = vpow.pop %v1076
        %v1078 = vmul.f32 %v1073, 1.442695
        %v1079 = vpow.pop %v1078
        %v1080 = vmul.f32 %v1074, 1.442695
        %v1081 = vpow.pop %v1080
        %v1082 = vmul.f32 %v1075, 1.442695
        %v1083 = vpow.pop %v1082
        %v1084 = vsel %vm746, %v1077, 0.0
        %1085 = vadd.xlane.f32.xlu0 %v1084
        %v1086 = vpop.xlane.xlu0 %1085
        %v1087 = vsel %vm746, %v1079, 0.0
        %1088 = vadd.xlane.f32.xlu0 %v1087
        %v1089 = vpop.xlane.xlu0 %1088
        %v1090 = vsel %vm746, %v1081, 0.0
        %1091 = vadd.xlane.f32.xlu0 %v1090
        %v1092 = vpop.xlane.xlu0 %1091
        %v1093 = vsel %vm746, %v1083, 0.0
        %1094 = vadd.xlane.f32.xlu0 %v1093
        %v1095 = vpop.xlane.xlu0 %1094
        %v1096 = vrcp.pop %v1086
        %v1097 = vrcp.pop %v1089
        %v1098 = vrcp.pop %v1092
        %v1099 = vrcp.pop %v1095
        %v1100 = vmul.f32 %v1077, %v1096
        %v1101 = vmul.f32 %v1079, %v1097
        %v1102 = vmul.f32 %v1081, %v1098
        %v1103 = vmul.f32 %v1083, %v1099
        %v1105 = vsel %vm746, %v1100, 0
        %1107 = vmatprep.subr.mxu0 0.0
        %1108 = vmatpush1.msra.mxu0 %v650
        %1109 = vmatprep.subr.mxu0 0.0
        %1110 = vmatpush1.msra.mxu0 0.0
        %1111 = vmatprep.subr.mxu0 0.0
        %1112 = vmatpush1.msra.mxu0 0.0
        %1113 = vmatprep.subr.mxu0 0.0
        %1114 = vmatpush1.msra.mxu0 0.0
        %1115 = vmatprep.subr.mxu0 0.0
        %1116 = vmatpush1.msra.mxu0 0.0
        %1117 = vmatprep.subr.mxu0 0.0
        %1118 = vmatpush1.msra.mxu0 0.0
        %1119 = vmatprep.subr.mxu0 0.0
        %1120 = vmatpush1.msra.mxu0 0.0
        %1121 = vmatprep.subr.mxu0 0.0
        %1122 = vmatpush1.msra.mxu0 0.0
        %1123 = vmatprep.subr.mxu0 0.0
        %1124 = vmatpush1.msra.mxu0 0.0
        %1125 = vmatprep.subr.mxu0 0.0
        %1126 = vmatpush1.msra.mxu0 0.0
        %1127 = vmatprep.subr.mxu0 0.0
        %1128 = vmatpush1.msra.mxu0 0.0
        %1129 = vmatprep.subr.mxu0 0.0
        %1130 = vmatpush1.msra.mxu0 0.0
        %1131 = vmatprep.subr.mxu0 0.0
        %1132 = vmatpush1.msra.mxu0 0.0
        %1133 = vmatprep.subr.mxu0 0.0
        %1134 = vmatpush1.msra.mxu0 0.0
        %1135 = vmatprep.subr.mxu0 0.0
        %1136 = vmatpush1.msra.mxu0 0.0
        %1137 = vmatprep.subr.mxu0 0.0
        %1138 = vmatpush1.msra.mxu0 0.0
        %1139 = vmatprep.subr.mxu0 0.0
        %1140 = vmatpush1.msra.mxu0 0.0
        %1141 = vmatprep.subr.mxu0 0.0
        %1142 = vmatpush1.msra.mxu0 0.0
        %1143 = vmatprep.subr.mxu0 0.0
        %1144 = vmatpush1.msra.mxu0 0.0
        %1145 = vmatprep.subr.mxu0 0.0
        %1146 = vmatpush1.msra.mxu0 0.0
        %1147 = vmatprep.subr.mxu0 0.0
        %1148 = vmatpush1.msra.mxu0 0.0
        %1149 = vmatprep.subr.mxu0 0.0
        %1150 = vmatpush1.msra.mxu0 0.0
        %1151 = vmatprep.subr.mxu0 0.0
        %1152 = vmatpush1.msra.mxu0 0.0
        %1153 = vmatprep.subr.mxu0 0.0
        %1154 = vmatpush1.msra.mxu0 0.0
        %1155 = vmatprep.subr.mxu0 0.0
        %1156 = vmatpush1.msra.mxu0 0.0
        %1157 = vmatprep.subr.mxu0 0.0
        %1158 = vmatpush1.msra.mxu0 0.0
        %1159 = vmatprep.subr.mxu0 0.0
        %1160 = vmatpush1.msra.mxu0 0.0
        %1161 = vmatprep.subr.mxu0 0.0
        %1162 = vmatpush1.msra.mxu0 0.0
        %1163 = vmatprep.subr.mxu0 0.0
        %1164 = vmatpush1.msra.mxu0 0.0
        %1165 = vmatprep.subr.mxu0 0.0
        %1166 = vmatpush1.msra.mxu0 0.0
        %1167 = vmatprep.subr.mxu0 0.0
        %1168 = vmatpush1.msra.mxu0 0.0
        %1169 = vmatprep.subr.mxu0 0.0
        %1170 = vmatpush1.msra.mxu0 0.0
        %1171 = vmatprep.mubr.f32.mxu0 0.0
        %1172 = vmatmul.mubr.f32.gmra.mrb[0].mxu0 %v1105
        %v1173 = vpop.f32.mrb[0].mxu0
        %v1174 = vadd.f32 0.0, %v1173
        %v1175 = vpop.f32.mrb[0].mxu0
        %1176 = vdwg.mxu0
        %v1178 = vsel %vm746, %v1101, 0
        %1180 = vmatprep.subr.mxu0 0.0
        %1181 = vmatpush1.msra.mxu0 %v650
        %1182 = vmatprep.subr.mxu0 0.0
        %1183 = vmatpush1.msra.mxu0 0.0
        %1184 = vmatprep.subr.mxu0 0.0
        %1185 = vmatpush1.msra.mxu0 0.0
        %1186 = vmatprep.subr.mxu0 0.0
        %1187 = vmatpush1.msra.mxu0 0.0
        %1188 = vmatprep.subr.mxu0 0.0
        %1189 = vmatpush1.msra.mxu0 0.0
        %1190 = vmatprep.subr.mxu0 0.0
        %1191 = vmatpush1.msra.mxu0 0.0
        %1192 = vmatprep.subr.mxu0 0.0
        %1193 = vmatpush1.msra.mxu0 0.0
        %1194 = vmatprep.subr.mxu0 0.0
        %1195 = vmatpush1.msra.mxu0 0.0
        %1196 = vmatprep.subr.mxu0 0.0
        %1197 = vmatpush1.msra.mxu0 0.0
        %1198 = vmatprep.subr.mxu0 0.0
        %1199 = vmatpush1.msra.mxu0 0.0
        %1200 = vmatprep.subr.mxu0 0.0
        %1201 = vmatpush1.msra.mxu0 0.0
        %1202 = vmatprep.subr.mxu0 0.0
        %1203 = vmatpush1.msra.mxu0 0.0
        %1204 = vmatprep.subr.mxu0 0.0
        %1205 = vmatpush1.msra.mxu0 0.0
        %1206 = vmatprep.subr.mxu0 0.0
        %1207 = vmatpush1.msra.mxu0 0.0
        %1208 = vmatprep.subr.mxu0 0.0
        %1209 = vmatpush1.msra.mxu0 0.0
        %1210 = vmatprep.subr.mxu0 0.0
        %1211 = vmatpush1.msra.mxu0 0.0
        %1212 = vmatprep.subr.mxu0 0.0
        %1213 = vmatpush1.msra.mxu0 0.0
        %1214 = vmatprep.subr.mxu0 0.0
        %1215 = vmatpush1.msra.mxu0 0.0
        %1216 = vmatprep.subr.mxu0 0.0
        %1217 = vmatpush1.msra.mxu0 0.0
        %1218 = vmatprep.subr.mxu0 0.0
        %1219 = vmatpush1.msra.mxu0 0.0
        %1220 = vmatprep.subr.mxu0 0.0
        %1221 = vmatpush1.msra.mxu0 0.0
        %1222 = vmatprep.subr.mxu0 0.0
        %1223 = vmatpush1.msra.mxu0 0.0
        %1224 = vmatprep.subr.mxu0 0.0
        %1225 = vmatpush1.msra.mxu0 0.0
        %1226 = vmatprep.subr.mxu0 0.0
        %1227 = vmatpush1.msra.mxu0 0.0
        %1228 = vmatprep.subr.mxu0 0.0
        %1229 = vmatpush1.msra.mxu0 0.0
        %1230 = vmatprep.subr.mxu0 0.0
        %1231 = vmatpush1.msra.mxu0 0.0
        %1232 = vmatprep.subr.mxu0 0.0
        %1233 = vmatpush1.msra.mxu0 0.0
        %1234 = vmatprep.subr.mxu0 0.0
        %1235 = vmatpush1.msra.mxu0 0.0
        %1236 = vmatprep.subr.mxu0 0.0
        %1237 = vmatpush1.msra.mxu0 0.0
        %1238 = vmatprep.subr.mxu0 0.0
        %1239 = vmatpush1.msra.mxu0 0.0
        %1240 = vmatprep.subr.mxu0 0.0
        %1241 = vmatpush1.msra.mxu0 0.0
        %1242 = vmatprep.subr.mxu0 0.0
        %1243 = vmatpush1.msra.mxu0 0.0
        %1244 = vmatprep.mubr.f32.mxu0 0.0
        %1245 = vmatmul.mubr.f32.gmra.mrb[0].mxu0 %v1178
        %v1246 = vpop.f32.mrb[0].mxu0
        %v1247 = vadd.f32 0.0, %v1246
        %v1248 = vpop.f32.mrb[0].mxu0
        %1249 = vdwg.mxu0
        %v1251 = vsel %vm746, %v1102, 0
        %1253 = vmatprep.subr.mxu0 0.0
        %1254 = vmatpush1.msra.mxu0 %v669
        %1255 = vmatprep.subr.mxu0 0.0
        %1256 = vmatpush1.msra.mxu0 0.0
        %1257 = vmatprep.subr.mxu0 0.0
        %1258 = vmatpush1.msra.mxu0 0.0
        %1259 = vmatprep.subr.mxu0 0.0
        %1260 = vmatpush1.msra.mxu0 0.0
        %1261 = vmatprep.subr.mxu0 0.0
        %1262 = vmatpush1.msra.mxu0 0.0
        %1263 = vmatprep.subr.mxu0 0.0
        %1264 = vmatpush1.msra.mxu0 0.0
        %1265 = vmatprep.subr.mxu0 0.0
        %1266 = vmatpush1.msra.mxu0 0.0
        %1267 = vmatprep.subr.mxu0 0.0
        %1268 = vmatpush1.msra.mxu0 0.0
        %1269 = vmatprep.subr.mxu0 0.0
        %1270 = vmatpush1.msra.mxu0 0.0
        %1271 = vmatprep.subr.mxu0 0.0
        %1272 = vmatpush1.msra.mxu0 0.0
        %1273 = vmatprep.subr.mxu0 0.0
        %1274 = vmatpush1.msra.mxu0 0.0
        %1275 = vmatprep.subr.mxu0 0.0
        %1276 = vmatpush1.msra.mxu0 0.0
        %1277 = vmatprep.subr.mxu0 0.0
        %1278 = vmatpush1.msra.mxu0 0.0
        %1279 = vmatprep.subr.mxu0 0.0
        %1280 = vmatpush1.msra.mxu0 0.0
        %1281 = vmatprep.subr.mxu0 0.0
        %1282 = vmatpush1.msra.mxu0 0.0
        %1283 = vmatprep.subr.mxu0 0.0
        %1284 = vmatpush1.msra.mxu0 0.0
        %1285 = vmatprep.subr.mxu0 0.0
        %1286 = vmatpush1.msra.mxu0 0.0
        %1287 = vmatprep.subr.mxu0 0.0
        %1288 = vmatpush1.msra.mxu0 0.0
        %1289 = vmatprep.subr.mxu0 0.0
        %1290 = vmatpush1.msra.mxu0 0.0
        %1291 = vmatprep.subr.mxu0 0.0
        %1292 = vmatpush1.msra.mxu0 0.0
        %1293 = vmatprep.subr.mxu0 0.0
        %1294 = vmatpush1.msra.mxu0 0.0
        %1295 = vmatprep.subr.mxu0 0.0
        %1296 = vmatpush1.msra.mxu0 0.0
        %1297 = vmatprep.subr.mxu0 0.0
        %1298 = vmatpush1.msra.mxu0 0.0
        %1299 = vmatprep.subr.mxu0 0.0
        %1300 = vmatpush1.msra.mxu0 0.0
        %1301 = vmatprep.subr.mxu0 0.0
        %1302 = vmatpush1.msra.mxu0 0.0
        %1303 = vmatprep.subr.mxu0 0.0
        %1304 = vmatpush1.msra.mxu0 0.0
        %1305 = vmatprep.subr.mxu0 0.0
        %1306 = vmatpush1.msra.mxu0 0.0
        %1307 = vmatprep.subr.mxu0 0.0
        %1308 = vmatpush1.msra.mxu0 0.0
        %1309 = vmatprep.subr.mxu0 0.0
        %1310 = vmatpush1.msra.mxu0 0.0
        %1311 = vmatprep.subr.mxu0 0.0
        %1312 = vmatpush1.msra.mxu0 0.0
        %1313 = vmatprep.subr.mxu0 0.0
        %1314 = vmatpush1.msra.mxu0 0.0
        %1315 = vmatprep.subr.mxu0 0.0
        %1316 = vmatpush1.msra.mxu0 0.0
        %1317 = vmatprep.mubr.f32.mxu0 0.0
        %1318 = vmatmul.mubr.f32.gmra.mrb[0].mxu0 %v1251
        %v1319 = vpop.f32.mrb[0].mxu0
        %v1320 = vadd.f32 0.0, %v1319
        %v1321 = vpop.f32.mrb[0].mxu0
        %1322 = vdwg.mxu0
        %v1324 = vsel %vm746, %v1103, 0
        %1326 = vmatprep.subr.mxu0 0.0
        %1327 = vmatpush1.msra.mxu0 %v669
        %1328 = vmatprep.subr.mxu0 0.0
        %1329 = vmatpush1.msra.mxu0 0.0
        %1330 = vmatprep.subr.mxu0 0.0
        %1331 = vmatpush1.msra.mxu0 0.0
        %1332 = vmatprep.subr.mxu0 0.0
        %1333 = vmatpush1.msra.mxu0 0.0
        %1334 = vmatprep.subr.mxu0 0.0
        %1335 = vmatpush1.msra.mxu0 0.0
        %1336 = vmatprep.subr.mxu0 0.0
        %1337 = vmatpush1.msra.mxu0 0.0
        %1338 = vmatprep.subr.mxu0 0.0
        %1339 = vmatpush1.msra.mxu0 0.0
        %1340 = vmatprep.subr.mxu0 0.0
        %1341 = vmatpush1.msra.mxu0 0.0
        %1342 = vmatprep.subr.mxu0 0.0
        %1343 = vmatpush1.msra.mxu0 0.0
        %1344 = vmatprep.subr.mxu0 0.0
        %1345 = vmatpush1.msra.mxu0 0.0
        %1346 = vmatprep.subr.mxu0 0.0
        %1347 = vmatpush1.msra.mxu0 0.0
        %1348 = vmatprep.subr.mxu0 0.0
        %1349 = vmatpush1.msra.mxu0 0.0
        %1350 = vmatprep.subr.mxu0 0.0
        %1351 = vmatpush1.msra.mxu0 0.0
        %1352 = vmatprep.subr.mxu0 0.0
        %1353 = vmatpush1.msra.mxu0 0.0
        %1354 = vmatprep.subr.mxu0 0.0
        %1355 = vmatpush1.msra.mxu0 0.0
        %1356 = vmatprep.subr.mxu0 0.0
        %1357 = vmatpush1.msra.mxu0 0.0
        %1358 = vmatprep.subr.mxu0 0.0
        %1359 = vmatpush1.msra.mxu0 0.0
        %1360 = vmatprep.subr.mxu0 0.0
        %1361 = vmatpush1.msra.mxu0 0.0
        %1362 = vmatprep.subr.mxu0 0.0
        %1363 = vmatpush1.msra.mxu0 0.0
        %1364 = vmatprep.subr.mxu0 0.0
        %1365 = vmatpush1.msra.mxu0 0.0
        %1366 = vmatprep.subr.mxu0 0.0
        %1367 = vmatpush1.msra.mxu0 0.0
        %1368 = vmatprep.subr.mxu0 0.0
        %1369 = vmatpush1.msra.mxu0 0.0
        %1370 = vmatprep.subr.mxu0 0.0
        %1371 = vmatpush1.msra.mxu0 0.0
        %1372 = vmatprep.subr.mxu0 0.0
        %1373 = vmatpush1.msra.mxu0 0.0
        %1374 = vmatprep.subr.mxu0 0.0
        %1375 = vmatpush1.msra.mxu0 0.0
        %1376 = vmatprep.subr.mxu0 0.0
        %1377 = vmatpush1.msra.mxu0 0.0
        %1378 = vmatprep.subr.mxu0 0.0
        %1379 = vmatpush1.msra.mxu0 0.0
        %1380 = vmatprep.subr.mxu0 0.0
        %1381 = vmatpush1.msra.mxu0 0.0
        %1382 = vmatprep.subr.mxu0 0.0
        %1383 = vmatpush1.msra.mxu0 0.0
        %1384 = vmatprep.subr.mxu0 0.0
        %1385 = vmatpush1.msra.mxu0 0.0
        %1386 = vmatprep.subr.mxu0 0.0
        %1387 = vmatpush1.msra.mxu0 0.0
        %1388 = vmatprep.subr.mxu0 0.0
        %1389 = vmatpush1.msra.mxu0 0.0
        %1390 = vmatprep.mubr.f32.mxu0 0.0
        %1391 = vmatmul.mubr.f32.gmra.mrb[0].mxu0 %v1324
        %v1392 = vpop.f32.mrb[0].mxu0
        %v1393 = vadd.f32 0.0, %v1392
        %v1394 = vpop.f32.mrb[0].mxu0
        %1395 = vdwg.mxu0
        %1396 = vst.msk [vmem:[#allocation2] sm:$0xff] %vm746, %v1174
        %1398 = vrot.lane.b32.xlu0 %v1247, 8
        %v1399 = vpop.permute.xlu0 %1398
        %vm1401 = vcmask 130112
        %1402 = vst.msk [vmem:[#allocation2] sm:$0xff] %vm1401, %v1399
        %1404 = vrot.lane.b32.xlu0 %v1320, 16
        %v1405 = vpop.permute.xlu0 %1404
        %vm1407 = vcmask 195712
        %1408 = vst.msk [vmem:[#allocation2] sm:$0xff] %vm1407, %v1405
        %1410 = vrot.lane.b32.xlu0 %v1393, 24
        %v1411 = vpop.permute.xlu0 %1410
        %vm1413 = vcmask 261312
        %1414 = vst.msk [vmem:[#allocation2] sm:$0xff] %vm1413, %v1411
        %v1415 = vld [vmem:[#allocation2] sm:$0xff]
        %v1416 = vld [vmem:[%s5] sm:$0xff]
        %v1417 = vld [vmem:[%s5 + $0x8] sm:$0xff]
        %v1418 = vld [vmem:[%s5 + $0x10] sm:$0xff]
        %v1419 = vld [vmem:[%s5 + $0x18] sm:$0xff]
        %v1421 = vsel %vm411, %v1415, 0
        %1423 = vmatprep.subr.mxu0 0.0
        %1424 = vmatpush1.msra.mxu0 %v1416
        %1425 = vmatprep.subr.mxu0 0.0
        %1426 = vmatpush1.msra.mxu0 %v1417
        %1427 = vmatprep.subr.mxu0 0.0
        %1428 = vmatpush1.msra.mxu0 %v1418
        %1429 = vmatprep.subr.mxu0 0.0
        %1430 = vmatpush1.msra.mxu0 %v1419
        %1431 = vmatprep.subr.mxu0 0.0
        %1432 = vmatpush1.msra.mxu0 0.0
        %1433 = vmatprep.subr.mxu0 0.0
        %1434 = vmatpush1.msra.mxu0 0.0
        %1435 = vmatprep.subr.mxu0 0.0
        %1436 = vmatpush1.msra.mxu0 0.0
        %1437 = vmatprep.subr.mxu0 0.0
        %1438 = vmatpush1.msra.mxu0 0.0
        %1439 = vmatprep.subr.mxu0 0.0
        %1440 = vmatpush1.msra.mxu0 0.0
        %1441 = vmatprep.subr.mxu0 0.0
        %1442 = vmatpush1.msra.mxu0 0.0
        %1443 = vmatprep.subr.mxu0 0.0
        %1444 = vmatpush1.msra.mxu0 0.0
        %1445 = vmatprep.subr.mxu0 0.0
        %1446 = vmatpush1.msra.mxu0 0.0
        %1447 = vmatprep.subr.mxu0 0.0
        %1448 = vmatpush1.msra.mxu0 0.0
        %1449 = vmatprep.subr.mxu0 0.0
        %1450 = vmatpush1.msra.mxu0 0.0
        %1451 = vmatprep.subr.mxu0 0.0
        %1452 = vmatpush1.msra.mxu0 0.0
        %1453 = vmatprep.subr.mxu0 0.0
        %1454 = vmatpush1.msra.mxu0 0.0
        %1455 = vmatprep.subr.mxu0 0.0
        %1456 = vmatpush1.msra.mxu0 0.0
        %1457 = vmatprep.subr.mxu0 0.0
        %1458 = vmatpush1.msra.mxu0 0.0
        %1459 = vmatprep.subr.mxu0 0.0
        %1460 = vmatpush1.msra.mxu0 0.0
        %1461 = vmatprep.subr.mxu0 0.0
        %1462 = vmatpush1.msra.mxu0 0.0
        %1463 = vmatprep.subr.mxu0 0.0
        %1464 = vmatpush1.msra.mxu0 0.0
        %1465 = vmatprep.subr.mxu0 0.0
        %1466 = vmatpush1.msra.mxu0 0.0
        %1467 = vmatprep.subr.mxu0 0.0
        %1468 = vmatpush1.msra.mxu0 0.0
        %1469 = vmatprep.subr.mxu0 0.0
        %1470 = vmatpush1.msra.mxu0 0.0
        %1471 = vmatprep.subr.mxu0 0.0
        %1472 = vmatpush1.msra.mxu0 0.0
        %1473 = vmatprep.subr.mxu0 0.0
        %1474 = vmatpush1.msra.mxu0 0.0
        %1475 = vmatprep.subr.mxu0 0.0
        %1476 = vmatpush1.msra.mxu0 0.0
        %1477 = vmatprep.subr.mxu0 0.0
        %1478 = vmatpush1.msra.mxu0 0.0
        %1479 = vmatprep.subr.mxu0 0.0
        %1480 = vmatpush1.msra.mxu0 0.0
        %1481 = vmatprep.subr.mxu0 0.0
        %1482 = vmatpush1.msra.mxu0 0.0
        %1483 = vmatprep.subr.mxu0 0.0
        %1484 = vmatpush1.msra.mxu0 0.0
        %1485 = vmatprep.subr.mxu0 0.0
        %1486 = vmatpush1.msra.mxu0 0.0
        %1487 = vmatprep.mubr.f32.mxu0 0.0
        %1488 = vmatmul.mubr.f32.gmra.mrb[0].mxu0 %v1421
        %v1489 = vpop.f32.mrb[0].mxu0
        %v1490 = vadd.f32 0.0, %v1489
        %v1491 = vpop.f32.mrb[0].mxu0
        %1492 = vdwg.mxu0
        %v1493 = vadd.f32 %v409, %v1490
        %v1494 = vmul.f32 %v1493, %v1493
        %v1495 = vsel %vm411, %v1494, 0.0
        %1496 = vadd.xlane.f32.xlu0 %v1495
        %v1497 = vpop.xlane.xlu0 %1496
        %v1498 = vmul.f32 %v1497, %v415
        %v1499 = vadd.f32 %v1498, 1e-05
        %v1500 = vrsqrt.pop %v1499
        %v1501 = vmul.f32 %v1493, %v1500
        %v1502 = vld [vmem:[%s6] sm:$0x1]
        %v1504 = vlaneseq
        %v1505 = vshrl.u32 %v1504, 7
        %v1506 = vsub.s32 0, %v1505
        %v1507 = vrot.slane %v1502, %v1506
        %v1509 = vmul.f32 %v1501, %v1507
        %v1510 = vld [vmem:[%s7] sm:$0xff]
        %v1511 = vld [vmem:[%s7 + $0x8] sm:$0xff]
        %v1512 = vld [vmem:[%s7 + $0x10] sm:$0xff]
        %v1513 = vld [vmem:[%s7 + $0x18] sm:$0xff]
        %v1515 = vsel %vm411, %v1509, 0
        %1517 = vmatprep.subr.mxu0 0.0
        %1518 = vmatpush1.msra.mxu0 %v1510
        %1519 = vmatprep.subr.mxu0 0.0
        %1520 = vmatpush1.msra.mxu0 %v1511
        %1521 = vmatprep.subr.mxu0 0.0
        %1522 = vmatpush1.msra.mxu0 %v1512
        %1523 = vmatprep.subr.mxu0 0.0
        %1524 = vmatpush1.msra.mxu0 %v1513
        %1525 = vmatprep.subr.mxu0 0.0
        %1526 = vmatpush1.msra.mxu0 0.0
        %1527 = vmatprep.subr.mxu0 0.0
        %1528 = vmatpush1.msra.mxu0 0.0
        %1529 = vmatprep.subr.mxu0 0.0
        %1530 = vmatpush1.msra.mxu0 0.0
        %1531 = vmatprep.subr.mxu0 0.0
        %1532 = vmatpush1.msra.mxu0 0.0
        %1533 = vmatprep.subr.mxu0 0.0
        %1534 = vmatpush1.msra.mxu0 0.0
        %1535 = vmatprep.subr.mxu0 0.0
        %1536 = vmatpush1.msra.mxu0 0.0
        %1537 = vmatprep.subr.mxu0 0.0
        %1538 = vmatpush1.msra.mxu0 0.0
        %1539 = vmatprep.subr.mxu0 0.0
        %1540 = vmatpush1.msra.mxu0 0.0
        %1541 = vmatprep.subr.mxu0 0.0
        %1542 = vmatpush1.msra.mxu0 0.0
        %1543 = vmatprep.subr.mxu0 0.0
        %1544 = vmatpush1.msra.mxu0 0.0
        %1545 = vmatprep.subr.mxu0 0.0
        %1546 = vmatpush1.msra.mxu0 0.0
        %1547 = vmatprep.subr.mxu0 0.0
        %1548 = vmatpush1.msra.mxu0 0.0
        %1549 = vmatprep.subr.mxu0 0.0
        %1550 = vmatpush1.msra.mxu0 0.0
        %1551 = vmatprep.subr.mxu0 0.0
        %1552 = vmatpush1.msra.mxu0 0.0
        %1553 = vmatprep.subr.mxu0 0.0
        %1554 = vmatpush1.msra.mxu0 0.0
        %1555 = vmatprep.subr.mxu0 0.0
        %1556 = vmatpush1.msra.mxu0 0.0
        %1557 = vmatprep.subr.mxu0 0.0
        %1558 = vmatpush1.msra.mxu0 0.0
        %1559 = vmatprep.subr.mxu0 0.0
        %1560 = vmatpush1.msra.mxu0 0.0
        %1561 = vmatprep.subr.mxu0 0.0
        %1562 = vmatpush1.msra.mxu0 0.0
        %1563 = vmatprep.subr.mxu0 0.0
        %1564 = vmatpush1.msra.mxu0 0.0
        %1565 = vmatprep.subr.mxu0 0.0
        %1566 = vmatpush1.msra.mxu0 0.0
        %1567 = vmatprep.subr.mxu0 0.0
        %1568 = vmatpush1.msra.mxu0 0.0
        %1569 = vmatprep.subr.mxu0 0.0
        %1570 = vmatpush1.msra.mxu0 0.0
        %1571 = vmatprep.subr.mxu0 0.0
        %1572 = vmatpush1.msra.mxu0 0.0
        %1573 = vmatprep.subr.mxu0 0.0
        %1574 = vmatpush1.msra.mxu0 0.0
        %1575 = vmatprep.subr.mxu0 0.0
        %1576 = vmatpush1.msra.mxu0 0.0
        %1577 = vmatprep.subr.mxu0 0.0
        %1578 = vmatpush1.msra.mxu0 0.0
        %1579 = vmatprep.subr.mxu0 0.0
        %1580 = vmatpush1.msra.mxu0 0.0
        %1581 = vmatprep.mubr.f32.mxu0 0.0
        %1582 = vmatmul.mubr.f32.gmra.mrb[0].mxu0 %v1515
        %v1583 = vpop.f32.mrb[0].mxu0
        %v1584 = vadd.f32 0.0, %v1583
        %v1585 = vpop.f32.mrb[0].mxu0
        %1586 = vdwg.mxu0
        %v1587 = vld [vmem:[%s8] sm:$0xff]
        %v1588 = vld [vmem:[%s8 + $0x8] sm:$0xff]
        %v1589 = vld [vmem:[%s8 + $0x10] sm:$0xff]
        %v1590 = vld [vmem:[%s8 + $0x18] sm:$0xff]
        %1591 = vmatprep.subr.mxu0 0.0
        %1592 = vmatpush1.msra.mxu0 %v1587
        %1593 = vmatprep.subr.mxu0 0.0
        %1594 = vmatpush1.msra.mxu0 %v1588
        %1595 = vmatprep.subr.mxu0 0.0
        %1596 = vmatpush1.msra.mxu0 %v1589
        %1597 = vmatprep.subr.mxu0 0.0
        %1598 = vmatpush1.msra.mxu0 %v1590
        %1599 = vmatprep.subr.mxu0 0.0
        %1600 = vmatpush1.msra.mxu0 0.0
        %1601 = vmatprep.subr.mxu0 0.0
        %1602 = vmatpush1.msra.mxu0 0.0
        %1603 = vmatprep.subr.mxu0 0.0
        %1604 = vmatpush1.msra.mxu0 0.0
        %1605 = vmatprep.subr.mxu0 0.0
        %1606 = vmatpush1.msra.mxu0 0.0
        %1607 = vmatprep.subr.mxu0 0.0
        %1608 = vmatpush1.msra.mxu0 0.0
        %1609 = vmatprep.subr.mxu0 0.0
        %1610 = vmatpush1.msra.mxu0 0.0
        %1611 = vmatprep.subr.mxu0 0.0
        %1612 = vmatpush1.msra.mxu0 0.0
        %1613 = vmatprep.subr.mxu0 0.0
        %1614 = vmatpush1.msra.mxu0 0.0
        %1615 = vmatprep.subr.mxu0 0.0
        %1616 = vmatpush1.msra.mxu0 0.0
        %1617 = vmatprep.subr.mxu0 0.0
        %1618 = vmatpush1.msra.mxu0 0.0
        %1619 = vmatprep.subr.mxu0 0.0
        %1620 = vmatpush1.msra.mxu0 0.0
        %1621 = vmatprep.subr.mxu0 0.0
        %1622 = vmatpush1.msra.mxu0 0.0
        %1623 = vmatprep.subr.mxu0 0.0
        %1624 = vmatpush1.msra.mxu0 0.0
        %1625 = vmatprep.subr.mxu0 0.0
        %1626 = vmatpush1.msra.mxu0 0.0
        %1627 = vmatprep.subr.mxu0 0.0
        %1628 = vmatpush1.msra.mxu0 0.0
        %1629 = vmatprep.subr.mxu0 0.0
        %1630 = vmatpush1.msra.mxu0 0.0
        %1631 = vmatprep.subr.mxu0 0.0
        %1632 = vmatpush1.msra.mxu0 0.0
        %1633 = vmatprep.subr.mxu0 0.0
        %1634 = vmatpush1.msra.mxu0 0.0
        %1635 = vmatprep.subr.mxu0 0.0
        %1636 = vmatpush1.msra.mxu0 0.0
        %1637 = vmatprep.subr.mxu0 0.0
        %1638 = vmatpush1.msra.mxu0 0.0
        %1639 = vmatprep.subr.mxu0 0.0
        %1640 = vmatpush1.msra.mxu0 0.0
        %1641 = vmatprep.subr.mxu0 0.0
        %1642 = vmatpush1.msra.mxu0 0.0
        %1643 = vmatprep.subr.mxu0 0.0
        %1644 = vmatpush1.msra.mxu0 0.0
        %1645 = vmatprep.subr.mxu0 0.0
        %1646 = vmatpush1.msra.mxu0 0.0
        %1647 = vmatprep.subr.mxu0 0.0
        %1648 = vmatpush1.msra.mxu0 0.0
        %1649 = vmatprep.subr.mxu0 0.0
        %1650 = vmatpush1.msra.mxu0 0.0
        %1651 = vmatprep.subr.mxu0 0.0
        %1652 = vmatpush1.msra.mxu0 0.0
        %1653 = vmatprep.subr.mxu0 0.0
        %1654 = vmatpush1.msra.mxu0 0.0
        %1655 = vmatprep.mubr.f32.mxu0 0.0
        %1656 = vmatmul.mubr.f32.gmra.mrb[0].mxu0 %v1515
        %v1657 = vpop.f32.mrb[0].mxu0
        %v1658 = vadd.f32 0.0, %v1657
        %v1659 = vpop.f32.mrb[0].mxu0
        %1660 = vdwg.mxu0
        %v1661 = vxor.u32 %v1584, 2147483648
        %v1662 = vmul.f32 %v1661, 1.442695
        %v1663 = vpow.pop %v1662
        %v1664 = vadd.f32 %v1663, 1.0
        %v1665 = vrcp.pop %v1664
        %v1666 = vmul.f32 1.0, %v1665
        %v1667 = vmul.f32 %v1584, %v1666
        %v1668 = vmul.f32 %v1667, %v1658
        %v1669 = vld [vmem:[%s9] sm:$0xff]
        %v1670 = vld [vmem:[%s9 + $0x8] sm:$0xff]
        %v1671 = vld [vmem:[%s9 + $0x10] sm:$0xff]
        %v1672 = vld [vmem:[%s9 + $0x18] sm:$0xff]
        %v1673 = vld [vmem:[%s9 + $0x20] sm:$0xff]
        %v1674 = vld [vmem:[%s9 + $0x28] sm:$0xff]
        %v1675 = vld [vmem:[%s9 + $0x30] sm:$0xff]
        %v1676 = vld [vmem:[%s9 + $0x38] sm:$0xff]
        %vm1677 = vcmask 523264
        %v1679 = vsel %vm1677, %v1668, 0
        %1681 = vmatprep.subr.mxu0 0.0
        %1682 = vmatpush1.msra.mxu0 %v1669
        %1683 = vmatprep.subr.mxu0 0.0
        %1684 = vmatpush1.msra.mxu0 %v1670
        %1685 = vmatprep.subr.mxu0 0.0
        %1686 = vmatpush1.msra.mxu0 %v1671
        %1687 = vmatprep.subr.mxu0 0.0
        %1688 = vmatpush1.msra.mxu0 %v1672
        %1689 = vmatprep.subr.mxu0 0.0
        %1690 = vmatpush1.msra.mxu0 %v1673
        %1691 = vmatprep.subr.mxu0 0.0
        %1692 = vmatpush1.msra.mxu0 %v1674
        %1693 = vmatprep.subr.mxu0 0.0
        %1694 = vmatpush1.msra.mxu0 %v1675
        %1695 = vmatprep.subr.mxu0 0.0
        %1696 = vmatpush1.msra.mxu0 %v1676
        %1697 = vmatprep.subr.mxu0 0.0
        %1698 = vmatpush1.msra.mxu0 0.0
        %1699 = vmatprep.subr.mxu0 0.0
        %1700 = vmatpush1.msra.mxu0 0.0
        %1701 = vmatprep.subr.mxu0 0.0
        %1702 = vmatpush1.msra.mxu0 0.0
        %1703 = vmatprep.subr.mxu0 0.0
        %1704 = vmatpush1.msra.mxu0 0.0
        %1705 = vmatprep.subr.mxu0 0.0
        %1706 = vmatpush1.msra.mxu0 0.0
        %1707 = vmatprep.subr.mxu0 0.0
        %1708 = vmatpush1.msra.mxu0 0.0
        %1709 = vmatprep.subr.mxu0 0.0
        %1710 = vmatpush1.msra.mxu0 0.0
        %1711 = vmatprep.subr.mxu0 0.0
        %1712 = vmatpush1.msra.mxu0 0.0
        %1713 = vmatprep.subr.mxu0 0.0
        %1714 = vmatpush1.msra.mxu0 0.0
        %1715 = vmatprep.subr.mxu0 0.0
        %1716 = vmatpush1.msra.mxu0 0.0
        %1717 = vmatprep.subr.mxu0 0.0
        %1718 = vmatpush1.msra.mxu0 0.0
        %1719 = vmatprep.subr.mxu0 0.0
        %1720 = vmatpush1.msra.mxu0 0.0
        %1721 = vmatprep.subr.mxu0 0.0
        %1722 = vmatpush1.msra.mxu0 0.0
        %1723 = vmatprep.subr.mxu0 0.0
        %1724 = vmatpush1.msra.mxu0 0.0
        %1725 = vmatprep.subr.mxu0 0.0
        %1726 = vmatpush1.msra.mxu0 0.0
        %1727 = vmatprep.subr.mxu0 0.0
        %1728 = vmatpush1.msra.mxu0 0.0
        %1729 = vmatprep.subr.mxu0 0.0
        %1730 = vmatpush1.msra.mxu0 0.0
        %1731 = vmatprep.subr.mxu0 0.0
        %1732 = vmatpush1.msra.mxu0 0.0
        %1733 = vmatprep.subr.mxu0 0.0
        %1734 = vmatpush1.msra.mxu0 0.0
        %1735 = vmatprep.subr.mxu0 0.0
        %1736 = vmatpush1.msra.mxu0 0.0
        %1737 = vmatprep.subr.mxu0 0.0
        %1738 = vmatpush1.msra.mxu0 0.0
        %1739 = vmatprep.subr.mxu0 0.0
        %1740 = vmatpush1.msra.mxu0 0.0
        %1741 = vmatprep.subr.mxu0 0.0
        %1742 = vmatpush1.msra.mxu0 0.0
        %1743 = vmatprep.subr.mxu0 0.0
        %1744 = vmatpush1.msra.mxu0 0.0
        %1745 = vmatprep.mubr.f32.mxu0 0.0
        %1746 = vmatmul.mubr.f32.gmra.mrb[0].mxu0 %v1679
        %v1747 = vpop.f32.mrb[0].mxu0
        %v1748 = vadd.f32 0.0, %v1747
        %v1749 = vpop.f32.mrb[0].mxu0
        %1750 = vdwg.mxu0
        %v1751 = vadd.f32 %v1493, %v1748
        %1752 = vst.msk [vmem:[%s404] sm:$0xff] %vm411, %v1751
        %s1753 = sand.u32 %s291, 1
        %s1754 = scalar_lea.sflag [#allocation4], %s1753
        %s1755 = sand.u32 %s291, 1
        %s1756 = smul.addr %s1755, 8
        %s1757 = scalar_lea.vmem [#allocation3], %s1756
        // Predicated region
        $region69: #{tpu_custom_call.1} parent=67 // pred_check
          %p1758 = pneg %p301
        $region70: #{tpu_custom_call.1} parent=67 // pred_check_branch
          %1760 = sbr.rel (%p1758) target = $region72
        $region71: #{tpu_custom_call.1} parent=67 // pred_region
          %s1762 = ssub.s32 128, 128
          %1763 = vsyncadd %s1754, %s1762
          %s1764 = smul.addr %s26, 128
          %s1765 = scalar_lea.hbm %s12, %s1764
          %s1767 = sshll.u32 %s1757, 4
          %s1768 = int_to_ptr.vmem [resolvable:$true] %s1767
          %1770 = dma.vmem_to_hbm [thread:$0]  %s1768, 128, %s1765, %s1754
        $region72: #{tpu_custom_call.1} parent=67 // pred_fallthru
          _
      $region68: #{tpu_custom_call.1} parent=5 // pred_fallthru
        _
      %p1771 = scmp.le.s32.totalorder 2, %s21
      // Predicated region
      $region73: #{tpu_custom_call.1} parent=5 // pred_check
        %p1772 = pneg %p1771
      $region74: #{tpu_custom_call.1} parent=5 // pred_check_branch
        %1774 = sbr.rel (%p1772) target = $region76
      $region75: #{tpu_custom_call.1} parent=5 // pred_region
        %s1775 = ssub.s32 %s21, 2
        // Predicated region
        $region77: #{tpu_custom_call.1} parent=75 // pred_check
          %p1776 = pneg %p307
        $region78: #{tpu_custom_call.1} parent=75 // pred_check_branch
          %1778 = sbr.rel (%p1776) target = $region80
        $region79: #{tpu_custom_call.1} parent=75 // pred_region
          %s1779 = sand.u32 %s292, 1
          %s1780 = scalar_lea.sflag [#allocation4], %s1779
          %s1781 = sand.u32 %s292, 1
          %s1782 = smul.addr %s1781, 8
          %s1783 = scalar_lea.vmem [#allocation3], %s1782
          %1784 = dma.done %s1780, 128
        $region80: #{tpu_custom_call.1} parent=75 // pred_fallthru
          _
      $region76: #{tpu_custom_call.1} parent=5 // pred_fallthru
        _
    $region6: #{tpu_custom_call.1} parent=1 // loop_footer
      %s25 = sadd.s32 1, %s21
    $region7: #{tpu_custom_call.1} parent=1 // loop_footer_branch
      %20 = sbr.rel target = $region3
    $region8: #{tpu_custom_call.1} parent=1 // loop_exit
      _
    %1785 = vsyncpa [#allocation4], 1
    %s1786 = scalar_lea.sflag [#allocation4], 1
    %1787 = vsyncpa %s1786, 1

</llo_original>
